<compile_context>
chip_gen: v6e
topology: v6e:2x2x1
jax: 0.10.0
libtpu: 0.0.40
codegen_flags: <defaults>
</compile_context>

<pallas_src>
import jax
import jax.numpy as jnp
from jax import lax
from jax.experimental import pallas as pl
from jax.experimental.pallas import tpu as pltpu


def attention_block_kernel(x_ref, w_gtp_ref, b_gtp_ref, ww_ref, bw_ref, out_ref):
    d = ww_ref.shape[0]                      # D = C // 8
    x = x_ref[...]                           # (TB, C), input dtype (MXU operand)

    # Fused g/theta/phi projection produced directly in the transposed
    # (feature, batch) layout:  proj_t[k, b] = sum_c W_t[k, c] * x[b, c].
    # (NT MXU form: contract the last dims of both operands.)
    proj_t = lax.dot_general(
        w_gtp_ref[...], x, (((1,), (1,)), ((), ())),
        preferred_element_type=jnp.float32)
    proj_t = proj_t + b_gtp_ref[...]         # (3D, TB) f32, lane-broadcast bias

    # Sublane-aligned slices (D is a multiple of 8 for any C % 64 == 0).
    g_t = proj_t[0 * d:1 * d, :]             # (D, TB)
    th_t = proj_t[1 * d:2 * d, :]            # (D, TB)
    ph_t = proj_t[2 * d:3 * d, :]            # (D, TB)

    # Analytic row max of f[b,i,j] = phi[b,i]*theta[b,j]:
    #   max_j = phi * (theta_max if phi >= 0 else theta_min)   (exact)
    th_max = jnp.max(th_t, axis=0, keepdims=True)   # (1, TB)
    th_min = jnp.min(th_t, axis=0, keepdims=True)   # (1, TB)
    m = ph_t * jnp.where(ph_t >= 0.0, th_max, th_min)   # (D, TB)

    # One fused sweep over j (chunks of 8 sublane rows): accumulate
    #   num[i,b] = sum_j exp(f - m)[j,i,b] * g[j,b]
    #   den[i,b] = sum_j exp(f - m)[j,i,b]
    # without materializing the full (D, D, TB) tensors.  Lane axis (TB) is
    # fully dense; the j-reduction is over the leading dim (plain VPU adds).
    num = jnp.zeros_like(ph_t)               # (D, TB) f32
    den = jnp.zeros_like(ph_t)
    for j0 in range(0, d, 8):
        th_c = th_t[j0:j0 + 8, :]            # (jc, TB), sublane-aligned slice
        g_c = g_t[j0:j0 + 8, :]              # (jc, TB)
        e_c = jnp.exp(th_c[:, None, :] * ph_t[None, :, :] - m[None, :, :])
        num = num + jnp.sum(e_c * g_c[:, None, :], axis=0)
        den = den + jnp.sum(e_c, axis=0)

    # Normalize after the weighted sum; den >= 1 (exact row max subtracted) so
    # the EUP approx reciprocal + one Newton-Raphson step is safe (~1e-8 rel).
    r = pl.reciprocal(den, approx=True)
    r = r * (2.0 - den * r)
    y_t = (num * r)                           # (D, TB) f32

    # Final D -> C projection: contract the leading (feature) axis of both
    # operands (TN MXU form, f32 operands) -> (TB, C); bias + residual in f32.
    w_y = lax.dot_general(
        y_t, ww_ref[...].astype(jnp.float32), (((0,), (0,)), ((), ())),
        preferred_element_type=jnp.float32)
    out_ref[...] = (w_y + bw_ref[...] + x.astype(jnp.float32)).astype(out_ref.dtype)


def _vmem_capacity_bytes():
    try:
        return int(pltpu.get_tpu_info().vmem_capacity_bytes)
    except Exception:
        return 64 * 1024 * 1024              # conservative fallback (v7x per-TC)


def _pick_block_b(B, C, D, vmem_cap):
    """Batch tile: lane-dense (multiple of 128) when possible, >= 2 grid steps
    so both v7x TensorCores get work, within a generation-aware VMEM budget."""
    budget = vmem_cap // 2                   # headroom for resident weights + scratch
    per_row = 4 * (8 * C + 40 * D)           # conservative f32 live bytes / batch row
    cap_rows = max(8, budget // max(per_row, 1))
    target = min(cap_rows, max(8, B // 2))   # keep >= 2 grid steps when B allows
    if target >= 128:
        blk = (target // 128) * 128          # keep the softmax core's lane axis dense
    else:
        blk = max(8, (target // 8) * 8)
    return min(blk, B)


def pack_params(params, dtype):
    """Per-model weight packing -- call ONCE, not every forward step."""
    w_gtp_t = jnp.concatenate([params["wg"], params["wt"], params["wp"]],
                              axis=1).T.astype(dtype)            # (3D, C)
    b_gtp_t = jnp.concatenate([params["bg"], params["bt"], params["bp"]],
                              axis=1).T.astype(jnp.float32)      # (3D, 1)
    ww = params["ww"].astype(dtype)                              # (D, C)
    bw = params["bw"].astype(jnp.float32)                        # (1, C)
    return w_gtp_t, b_gtp_t, ww, bw


def attention_block(x, packed, *, block_b=None):
    w_gtp_t, b_gtp_t, ww, bw = packed
    B, C = x.shape
    D = ww.shape[0]
    vmem_cap = _vmem_capacity_bytes()

    if block_b is None:
        block_b = _pick_block_b(B, C, D, vmem_cap)
    block_b = min(block_b, B)
    grid = (pl.cdiv(B, block_b),)

    flops = int(2 * B * C * 3 * D + 2 * B * D * C + 6 * B * D * D)
    transcendentals = int(B * D * D)
    bytes_accessed = int(
        2 * B * C * x.dtype.itemsize                       # x in + out
        + w_gtp_t.size * w_gtp_t.dtype.itemsize
        + ww.size * ww.dtype.itemsize
        + (b_gtp_t.size + bw.size) * 4)

    return pl.pallas_call(
        attention_block_kernel,
        out_shape=jax.ShapeDtypeStruct((B, C), x.dtype),
        grid=grid,
        in_specs=[
            pl.BlockSpec((block_b, C), lambda i: (i, 0)),   # x: streamed over batch
            pl.BlockSpec((3 * D, C), lambda i: (0, 0)),     # fused proj weight (resident)
            pl.BlockSpec((3 * D, 1), lambda i: (0, 0)),     # fused proj bias  (resident)
            pl.BlockSpec((D, C), lambda i: (0, 0)),         # W weight (resident)
            pl.BlockSpec((1, C), lambda i: (0, 0)),         # W bias   (resident)
        ],
        out_specs=pl.BlockSpec((block_b, C), lambda i: (i, 0)),
        compiler_params=pltpu.CompilerParams(
            dimension_semantics=("parallel",),              # v7x: 2 TCs split the batch grid
            vmem_limit_bytes=min(int(vmem_cap * 3 // 4), 112 * 1024 * 1024),
        ),
        cost_estimate=pl.CostEstimate(
            flops=flops,
            transcendentals=transcendentals,
            bytes_accessed=bytes_accessed),
    )(x, w_gtp_t, b_gtp_t, ww, bw)


def init_params(key, in_channels, dtype=jnp.float32):
    """Deterministic init mimicking nn.Linear's U(-1/sqrt(fan_in), 1/sqrt(fan_in)).
    Weights stored transposed: (in_features, out_features)."""
    d = in_channels // 8
    ks = jax.random.split(key, 8)

    def lin(kw, kb, fan_in, fan_out):
        bound = 1.0 / jnp.sqrt(fan_in)
        w = jax.random.uniform(kw, (fan_in, fan_out), dtype, -bound, bound)
        b = jax.random.uniform(kb, (1, fan_out), dtype, -bound, bound)
        return w, b

    wg, bg = lin(ks[0], ks[1], in_channels, d)
    wt, bt = lin(ks[2], ks[3], in_channels, d)
    wp, bp = lin(ks[4], ks[5], in_channels, d)
    ww, bw = lin(ks[6], ks[7], d, in_channels)
    return dict(wg=wg, bg=bg, wt=wt, bt=bt, wp=wp, bp=bp, ww=ww, bw=bw)


def attention_block_ref(x, p):
    """Pure-JAX reference mirroring the PyTorch forward exactly (f32 dots)."""
    hp = jax.lax.Precision.HIGHEST
    g_x = jnp.dot(x, p["wg"], precision=hp) + p["bg"]
    th_x = jnp.dot(x, p["wt"], precision=hp) + p["bt"]
    ph_x = jnp.dot(x, p["wp"], precision=hp) + p["bp"]
    f = ph_x[:, :, None] * th_x[:, None, :]
    f_div_c = jax.nn.softmax(f, axis=-1)
    y = jnp.einsum("bij,bj->bi", f_div_c, g_x, precision=hp)
    return jnp.dot(y, p["ww"], precision=hp) + p["bw"] + x


if __name__ == "__main__":
    # in_channels = 256 -> D = 32.  B = 256 so the auto-picked batch tile is 128:
    # the softmax core runs with a fully dense 128-lane axis and the grid has
    # 2 steps (both v7x TensorCores get work; x/out DMAs overlap compute).
    B, C = 256, 256
    key = jax.random.PRNGKey(0)
    kx, kp = jax.random.split(key)
    x = jax.random.normal(kx, (B, C), jnp.float32)
    params = init_params(kp, C)
    packed = pack_params(params, x.dtype)     # hoisted: pack weights once, not per call

    out = attention_block(x, packed)
    out = jax.block_until_ready(out)

    ref = attention_block_ref(x, params)
    assert out.shape == (B, C)
    # Tolerance allows for MXU f32 accumulation-order differences vs the
    # reference; any semantic bug would show up as O(0.1-1) errors.
    assert jnp.allclose(out, ref, atol=2e-4, rtol=2e-4), (
        "mismatch vs reference: max abs err = %g"
        % float(jnp.max(jnp.abs(out - ref))))
    print("KERNEL_OK")
</pallas_src>

<mosaic_0001>
module attributes {stable_mosaic.version = 11 : i64} {
  func.func @attention_block_kernel(%arg0: i32, %arg1: memref<128x256xf32, #tpu.memory_space<vmem>>, %arg2: memref<96x256xf32, #tpu.memory_space<vmem>>, %arg3: memref<96x1xf32, #tpu.memory_space<vmem>>, %arg4: memref<32x256xf32, #tpu.memory_space<vmem>>, %arg5: memref<1x256xf32, #tpu.memory_space<vmem>>, %arg6: memref<128x256xf32, #tpu.memory_space<vmem>>) attributes {dimension_semantics = [#tpu.dimension_semantics<parallel>], iteration_bounds = array<i64: 2>, scalar_prefetch = 0 : i64, scratch_operands = 0 : i64, tpu.core_type = #tpu.core_type<tc>, window_params = [{transform_indices = @transform_0, window_bounds = array<i64: 128, 256>}, {pipeline_mode = #tpu.pipeline_mode<synchronous>, transform_indices = @transform_1, window_bounds = array<i64: 96, 256>}, {pipeline_mode = #tpu.pipeline_mode<synchronous>, transform_indices = @transform_2, window_bounds = array<i64: 96, 1>}, {pipeline_mode = #tpu.pipeline_mode<synchronous>, transform_indices = @transform_3, window_bounds = array<i64: 32, 256>}, {pipeline_mode = #tpu.pipeline_mode<synchronous>, transform_indices = @transform_4, window_bounds = array<i64: 1, 256>}, {transform_indices = @transform_5, window_bounds = array<i64: 128, 256>}]} {
    %c0 = arith.constant 0 : index
    %c0_0 = arith.constant 0 : index
    %0 = vector.load %arg1[%c0, %c0_0] : memref<128x256xf32, #tpu.memory_space<vmem>>, vector<128x256xf32>
    %c0_1 = arith.constant 0 : index
    %c0_2 = arith.constant 0 : index
    %1 = vector.load %arg2[%c0_1, %c0_2] : memref<96x256xf32, #tpu.memory_space<vmem>>, vector<96x256xf32>
    %cst = arith.constant dense<0.000000e+00> : vector<96x128xf32>
    %2 = tpu.matmul %1, %0, %cst {dimension_numbers = #tpu.dot_dimension_numbers<[1], [1], [0], [0], [0, 0, 1, 0], [], []>} : vector<96x256xf32>, vector<128x256xf32>, vector<96x128xf32> -> vector<96x128xf32>
    %c0_3 = arith.constant 0 : index
    %c0_4 = arith.constant 0 : index
    %3 = vector.load %arg3[%c0_3, %c0_4] : memref<96x1xf32, #tpu.memory_space<vmem>>, vector<96x1xf32>
    %4 = vector.broadcast %3 : vector<96x1xf32> to vector<96x128xf32>
    %5 = arith.addf %2, %4 : vector<96x128xf32>
    %6 = vector.extract_strided_slice %5 {offsets = [0, 0], sizes = [32, 128], strides = [1, 1]} : vector<96x128xf32> to vector<32x128xf32>
    %7 = vector.extract_strided_slice %5 {offsets = [32, 0], sizes = [32, 128], strides = [1, 1]} : vector<96x128xf32> to vector<32x128xf32>
    %8 = vector.extract_strided_slice %5 {offsets = [64, 0], sizes = [32, 128], strides = [1, 1]} : vector<96x128xf32> to vector<32x128xf32>
    %cst_5 = arith.constant dense<0xFF800000> : vector<128xf32>
    %9 = vector.multi_reduction <maximumf>, %7, %cst_5 [0] : vector<32x128xf32> to vector<128xf32>
    %10 = vector.shape_cast %9 : vector<128xf32> to vector<1x128xf32>
    %cst_6 = arith.constant dense<0x7F800000> : vector<128xf32>
    %11 = vector.multi_reduction <minimumf>, %7, %cst_6 [0] : vector<32x128xf32> to vector<128xf32>
    %12 = vector.shape_cast %11 : vector<128xf32> to vector<1x128xf32>
    %cst_7 = arith.constant 0.000000e+00 : f32
    %13 = vector.broadcast %cst_7 : f32 to vector<32x128xf32>
    %14 = arith.cmpf oge, %8, %13 : vector<32x128xf32>
    %15 = vector.shape_cast %10 : vector<1x128xf32> to vector<1x128xf32>
    %16 = vector.broadcast %15 : vector<1x128xf32> to vector<32x128xf32>
    %17 = vector.shape_cast %12 : vector<1x128xf32> to vector<1x128xf32>
    %18 = vector.broadcast %17 : vector<1x128xf32> to vector<32x128xf32>
    %19 = arith.select %14, %16, %18 : vector<32x128xi1>, vector<32x128xf32>
    %20 = arith.mulf %8, %19 : vector<32x128xf32>
    %cst_8 = arith.constant 0.000000e+00 : f32
    %21 = vector.broadcast %cst_8 : f32 to vector<32x128xf32>
    %cst_9 = arith.constant 0.000000e+00 : f32
    %22 = vector.broadcast %cst_9 : f32 to vector<32x128xf32>
    %23 = vector.extract_strided_slice %7 {offsets = [0, 0], sizes = [8, 128], strides = [1, 1]} : vector<32x128xf32> to vector<8x128xf32>
    %24 = vector.extract_strided_slice %6 {offsets = [0, 0], sizes = [8, 128], strides = [1, 1]} : vector<32x128xf32> to vector<8x128xf32>
    %25 = vector.shape_cast %23 : vector<8x128xf32> to vector<8x1x128xf32>
    %26 = vector.shape_cast %8 : vector<32x128xf32> to vector<1x32x128xf32>
    %27 = vector.broadcast %25 : vector<8x1x128xf32> to vector<8x32x128xf32>
    %28 = vector.broadcast %26 : vector<1x32x128xf32> to vector<8x32x128xf32>
    %29 = arith.mulf %27, %28 : vector<8x32x128xf32>
    %30 = vector.shape_cast %20 : vector<32x128xf32> to vector<1x32x128xf32>
    %31 = vector.broadcast %30 : vector<1x32x128xf32> to vector<8x32x128xf32>
    %32 = arith.subf %29, %31 : vector<8x32x128xf32>
    %33 = math.exp %32 : vector<8x32x128xf32>
    %34 = vector.shape_cast %24 : vector<8x128xf32> to vector<8x1x128xf32>
    %35 = vector.broadcast %34 : vector<8x1x128xf32> to vector<8x32x128xf32>
    %36 = arith.mulf %33, %35 : vector<8x32x128xf32>
    %cst_10 = arith.constant dense<0.000000e+00> : vector<32x128xf32>
    %37 = vector.multi_reduction <add>, %36, %cst_10 [0] : vector<8x32x128xf32> to vector<32x128xf32>
    %38 = arith.addf %21, %37 : vector<32x128xf32>
    %cst_11 = arith.constant dense<0.000000e+00> : vector<32x128xf32>
    %39 = vector.multi_reduction <add>, %33, %cst_11 [0] : vector<8x32x128xf32> to vector<32x128xf32>
    %40 = arith.addf %22, %39 : vector<32x128xf32>
    %41 = vector.extract_strided_slice %7 {offsets = [8, 0], sizes = [8, 128], strides = [1, 1]} : vector<32x128xf32> to vector<8x128xf32>
    %42 = vector.extract_strided_slice %6 {offsets = [8, 0], sizes = [8, 128], strides = [1, 1]} : vector<32x128xf32> to vector<8x128xf32>
    %43 = vector.shape_cast %41 : vector<8x128xf32> to vector<8x1x128xf32>
    %44 = vector.shape_cast %8 : vector<32x128xf32> to vector<1x32x128xf32>
    %45 = vector.broadcast %43 : vector<8x1x128xf32> to vector<8x32x128xf32>
    %46 = vector.broadcast %44 : vector<1x32x128xf32> to vector<8x32x128xf32>
    %47 = arith.mulf %45, %46 : vector<8x32x128xf32>
    %48 = vector.shape_cast %20 : vector<32x128xf32> to vector<1x32x128xf32>
    %49 = vector.broadcast %48 : vector<1x32x128xf32> to vector<8x32x128xf32>
    %50 = arith.subf %47, %49 : vector<8x32x128xf32>
    %51 = math.exp %50 : vector<8x32x128xf32>
    %52 = vector.shape_cast %42 : vector<8x128xf32> to vector<8x1x128xf32>
    %53 = vector.broadcast %52 : vector<8x1x128xf32> to vector<8x32x128xf32>
    %54 = arith.mulf %51, %53 : vector<8x32x128xf32>
    %cst_12 = arith.constant dense<0.000000e+00> : vector<32x128xf32>
    %55 = vector.multi_reduction <add>, %54, %cst_12 [0] : vector<8x32x128xf32> to vector<32x128xf32>
    %56 = arith.addf %38, %55 : vector<32x128xf32>
    %cst_13 = arith.constant dense<0.000000e+00> : vector<32x128xf32>
    %57 = vector.multi_reduction <add>, %51, %cst_13 [0] : vector<8x32x128xf32> to vector<32x128xf32>
    %58 = arith.addf %40, %57 : vector<32x128xf32>
    %59 = vector.extract_strided_slice %7 {offsets = [16, 0], sizes = [8, 128], strides = [1, 1]} : vector<32x128xf32> to vector<8x128xf32>
    %60 = vector.extract_strided_slice %6 {offsets = [16, 0], sizes = [8, 128], strides = [1, 1]} : vector<32x128xf32> to vector<8x128xf32>
    %61 = vector.shape_cast %59 : vector<8x128xf32> to vector<8x1x128xf32>
    %62 = vector.shape_cast %8 : vector<32x128xf32> to vector<1x32x128xf32>
    %63 = vector.broadcast %61 : vector<8x1x128xf32> to vector<8x32x128xf32>
    %64 = vector.broadcast %62 : vector<1x32x128xf32> to vector<8x32x128xf32>
    %65 = arith.mulf %63, %64 : vector<8x32x128xf32>
    %66 = vector.shape_cast %20 : vector<32x128xf32> to vector<1x32x128xf32>
    %67 = vector.broadcast %66 : vector<1x32x128xf32> to vector<8x32x128xf32>
    %68 = arith.subf %65, %67 : vector<8x32x128xf32>
    %69 = math.exp %68 : vector<8x32x128xf32>
    %70 = vector.shape_cast %60 : vector<8x128xf32> to vector<8x1x128xf32>
    %71 = vector.broadcast %70 : vector<8x1x128xf32> to vector<8x32x128xf32>
    %72 = arith.mulf %69, %71 : vector<8x32x128xf32>
    %cst_14 = arith.constant dense<0.000000e+00> : vector<32x128xf32>
    %73 = vector.multi_reduction <add>, %72, %cst_14 [0] : vector<8x32x128xf32> to vector<32x128xf32>
    %74 = arith.addf %56, %73 : vector<32x128xf32>
    %cst_15 = arith.constant dense<0.000000e+00> : vector<32x128xf32>
    %75 = vector.multi_reduction <add>, %69, %cst_15 [0] : vector<8x32x128xf32> to vector<32x128xf32>
    %76 = arith.addf %58, %75 : vector<32x128xf32>
    %77 = vector.extract_strided_slice %7 {offsets = [24, 0], sizes = [8, 128], strides = [1, 1]} : vector<32x128xf32> to vector<8x128xf32>
    %78 = vector.extract_strided_slice %6 {offsets = [24, 0], sizes = [8, 128], strides = [1, 1]} : vector<32x128xf32> to vector<8x128xf32>
    %79 = vector.shape_cast %77 : vector<8x128xf32> to vector<8x1x128xf32>
    %80 = vector.shape_cast %8 : vector<32x128xf32> to vector<1x32x128xf32>
    %81 = vector.broadcast %79 : vector<8x1x128xf32> to vector<8x32x128xf32>
    %82 = vector.broadcast %80 : vector<1x32x128xf32> to vector<8x32x128xf32>
    %83 = arith.mulf %81, %82 : vector<8x32x128xf32>
    %84 = vector.shape_cast %20 : vector<32x128xf32> to vector<1x32x128xf32>
    %85 = vector.broadcast %84 : vector<1x32x128xf32> to vector<8x32x128xf32>
    %86 = arith.subf %83, %85 : vector<8x32x128xf32>
    %87 = math.exp %86 : vector<8x32x128xf32>
    %88 = vector.shape_cast %78 : vector<8x128xf32> to vector<8x1x128xf32>
    %89 = vector.broadcast %88 : vector<8x1x128xf32> to vector<8x32x128xf32>
    %90 = arith.mulf %87, %89 : vector<8x32x128xf32>
    %cst_16 = arith.constant dense<0.000000e+00> : vector<32x128xf32>
    %91 = vector.multi_reduction <add>, %90, %cst_16 [0] : vector<8x32x128xf32> to vector<32x128xf32>
    %92 = arith.addf %74, %91 : vector<32x128xf32>
    %cst_17 = arith.constant dense<0.000000e+00> : vector<32x128xf32>
    %93 = vector.multi_reduction <add>, %87, %cst_17 [0] : vector<8x32x128xf32> to vector<32x128xf32>
    %94 = arith.addf %76, %93 : vector<32x128xf32>
    %95 = tpu.reciprocal %94 {approx = true} : vector<32x128xf32> -> vector<32x128xf32>
    %96 = arith.mulf %94, %95 : vector<32x128xf32>
    %cst_18 = arith.constant 2.000000e+00 : f32
    %97 = vector.broadcast %cst_18 : f32 to vector<32x128xf32>
    %98 = arith.subf %97, %96 : vector<32x128xf32>
    %99 = arith.mulf %95, %98 : vector<32x128xf32>
    %100 = arith.mulf %92, %99 : vector<32x128xf32>
    %c0_19 = arith.constant 0 : index
    %c0_20 = arith.constant 0 : index
    %101 = vector.load %arg4[%c0_19, %c0_20] : memref<32x256xf32, #tpu.memory_space<vmem>>, vector<32x256xf32>
    %cst_21 = arith.constant dense<0.000000e+00> : vector<128x256xf32>
    %102 = tpu.matmul %100, %101, %cst_21 {dimension_numbers = #tpu.dot_dimension_numbers<[0], [0], [1], [1], [0, 1, 1, 1], [], []>} : vector<32x128xf32>, vector<32x256xf32>, vector<128x256xf32> -> vector<128x256xf32>
    %c0_22 = arith.constant 0 : index
    %c0_23 = arith.constant 0 : index
    %103 = vector.load %arg5[%c0_22, %c0_23] : memref<1x256xf32, #tpu.memory_space<vmem>>, vector<1x256xf32>
    %104 = vector.broadcast %103 : vector<1x256xf32> to vector<128x256xf32>
    %105 = arith.addf %102, %104 : vector<128x256xf32>
    %106 = arith.addf %105, %0 : vector<128x256xf32>
    %c0_24 = arith.constant 0 : index
    %c0_25 = arith.constant 0 : index
    %107 = vector.load %arg6[%c0_24, %c0_25] : memref<128x256xf32, #tpu.memory_space<vmem>>, vector<128x256xf32>
    tpu.vector_store %arg6[%c0_24, %c0_25], %106 {strides = array<i32>} : memref<128x256xf32, #tpu.memory_space<vmem>>, vector<128x256xf32>,
    return
  }
  func.func @transform_0(%arg0: i32) -> (i32, i32) {
    %c0_i32 = arith.constant 0 : i32
    %c0_i32_0 = arith.constant 0 : i32
    return %arg0, %c0_i32 : i32, i32
  }
  func.func @transform_1(%arg0: i32) -> (i32, i32) {
    %c0_i32 = arith.constant 0 : i32
    %c0_i32_0 = arith.constant 0 : i32
    %c0_i32_1 = arith.constant 0 : i32
    return %c0_i32, %c0_i32_0 : i32, i32
  }
  func.func @transform_2(%arg0: i32) -> (i32, i32) {
    %c0_i32 = arith.constant 0 : i32
    %c0_i32_0 = arith.constant 0 : i32
    %c0_i32_1 = arith.constant 0 : i32
    return %c0_i32, %c0_i32_0 : i32, i32
  }
  func.func @transform_3(%arg0: i32) -> (i32, i32) {
    %c0_i32 = arith.constant 0 : i32
    %c0_i32_0 = arith.constant 0 : i32
    %c0_i32_1 = arith.constant 0 : i32
    return %c0_i32, %c0_i32_0 : i32, i32
  }
  func.func @transform_4(%arg0: i32) -> (i32, i32) {
    %c0_i32 = arith.constant 0 : i32
    %c0_i32_0 = arith.constant 0 : i32
    %c0_i32_1 = arith.constant 0 : i32
    return %c0_i32, %c0_i32_0 : i32, i32
  }
  func.func @transform_5(%arg0: i32) -> (i32, i32) {
    %c0_i32 = arith.constant 0 : i32
    %c0_i32_0 = arith.constant 0 : i32
    return %arg0, %c0_i32 : i32, i32
  }
}

</mosaic_0001>

<llo_original>
// kernel: tpu_custom_call.1
$region0: #{tpu_custom_call.1}
  #allocation0 [shape = 'u32[]', space=smem, size = 0x4, offset = 0x4, fixed_abs, tag = 'smem constant byte address 0x4 - core index']
  #allocation1 [shape = 'u32[144,128]{1,0:T(1,128)}', space=vmem, size = 0x12000, scoped, tag = 'internal scratch']
  %s0 = inlined_call_operand.hbm [shape: f32[256,256], index: 0, kind: input, shape index: {}]
  %s1 = inlined_call_operand.hbm [shape: f32[96,256], index: 1, kind: input, shape index: {}]
  %s2 = inlined_call_operand.vmem [shape: f32[96,1], index: 2, kind: input, shape index: {}]
  %s3 = inlined_call_operand.vmem [shape: f32[32,256], index: 3, kind: input, shape index: {}]
  %s4 = inlined_call_operand.vmem [shape: f32[1,256], index: 4, kind: input, shape index: {}]
  %s5 = inlined_call_operand.hbm [shape: f32[256,256], index: 5, kind: output, shape index: {}]
  %s6 = sld [smem:[#allocation0]]
  $region61: #{tpu_custom_call.1} parent=0
    _
  %s8 = ssub.s32 1, %s6
  %s9 = scalar_select 0, %s8, %s6
  $region1: #{tpu_custom_call.1} parent=0
    #allocation2 [shape = 'u8[262144]{0}', space=vmem, size = 0x40000, scoped, tag = 'input window, operand 0']
    #allocation3 [shape = 's32[2]{0}', space=sflag, size = 0x8, scoped, tag = 'scoped memory for tpu_custom_call.1']
    #allocation4 [shape = 's32[2]{0}', space=sflag, size = 0x8, scoped, tag = 'scoped memory for tpu_custom_call.1']
    #allocation5 [shape = 'u8[98304]{0}', space=vmem, size = 0x18000, scoped, tag = 'input window, operand 1, single buffered']
    #allocation6 [shape = 's32[1]{0}', space=sflag, size = 0x4, scoped, tag = 'scoped memory for tpu_custom_call.1']
    #allocation7 [shape = 'u8[262144]{0}', space=vmem, size = 0x40000, scoped, tag = 'output window, operand 0']
    %10 = vsyncpa [#allocation3], 0
    %s11 = scalar_lea.sflag [#allocation3], 1
    %12 = vsyncpa %s11, 0
    %13 = vsyncpa [#allocation6], 0
    %14 = vsyncpa [#allocation4], 0
    %s15 = scalar_lea.sflag [#allocation4], 1
    %16 = vsyncpa %s15, 0
    loop: start=0, step=1, limit=4
    $region2: #{tpu_custom_call.1} parent=1 // loop_pre_header
      _
    $region3: #{tpu_custom_call.1} parent=1 // loop_header
      %s18 = sphi 0, %s22
      %p19 = scmp.ge.s32.totalorder %s18, 4
      %s28 = sphi 0, %s30
      %s31 = sphi 0, %s28
      %s32 = sphi 0, %s31
      %s48 = sphi 0, %s32
      %s52 = sphi 0, %s52
      %s54 = sphi 0, %s52
      %s55 = sphi 0, %s54
      %s69 = sphi 0, %s55
      %s73 = sphi 0, %s73
      %s75 = sphi 0, %s73
      %s76 = sphi 0, %s75
      %s90 = sphi 0, %s76
      %s94 = sphi 0, %s94
      %s96 = sphi 0, %s94
      %s97 = sphi 0, %s96
      %s111 = sphi 0, %s97
      %s115 = sphi 0, %s115
      %s117 = sphi 0, %s115
      %s118 = sphi 0, %s117
      %s132 = sphi 0, %s118
      %s138 = sphi 0, %s140
      %s141 = sphi 0, %s138
      %s142 = sphi 0, %s141
      %s158 = sphi 0, %s142
    $region4: #{tpu_custom_call.1} parent=1 // loop_header_branch
      %21 = sbr.rel (%p19) target = $region8
    $region5: #{tpu_custom_call.1} parent=1 // loop_body
      %s23 = ssub.s32 %s18, 1
      %s24 = ssub.s32 %s18, 2
      %s25 = sadd.s32 %s18, 1
      %s26 = ssub.s32 %s18, %s25
      %p27 = scmp.eq.s32.totalorder %s26, 0
      %s29 = sadd.s32 %s28, 1
      %s30 = scalar_select %p27, %s28, %s29
      %p33 = pneg %p27
      %p34 = scmp.eq.s32.totalorder %s18, 1
      %p35 = por %p33, %p34
      %p36 = scmp.ne.s32.totalorder %s28, %s31
      %p37 = scmp.eq.s32.totalorder %s18, 0
      %p38 = por %p36, %p37
      %p39 = scmp.ne.s32.totalorder %s28, %s31
      %p40 = scmp.eq.s32.totalorder %s23, 1
      %p41 = por %p39, %p40
      %p42 = scmp.ne.s32.totalorder %s31, %s32
      %p43 = scmp.eq.s32.totalorder %s23, 0
      %p44 = por %p42, %p43
      %p45 = scmp.ne.s32.totalorder %s31, %s32
      %p46 = scmp.eq.s32.totalorder %s24, 1
      %p47 = por %p45, %p46
      %p49 = scmp.ne.s32.totalorder %s32, %s48
      %p50 = scmp.eq.s32.totalorder %s24, 0
      %p51 = por %p49, %p50
      %s53 = sadd.s32 %s52, 1
      %p56 = scmp.eq.s32.totalorder %s18, 1
      %p57 = scmp.ne.s32.totalorder %s52, %s54
      %p58 = scmp.eq.s32.totalorder %s18, 0
      %p59 = por %p57, %p58
      %p60 = scmp.ne.s32.totalorder %s52, %s54
      %p61 = scmp.eq.s32.totalorder %s23, 1
      %p62 = por %p60, %p61
      %p63 = scmp.ne.s32.totalorder %s54, %s55
      %p64 = scmp.eq.s32.totalorder %s23, 0
      %p65 = por %p63, %p64
      %p66 = scmp.ne.s32.totalorder %s54, %s55
      %p67 = scmp.eq.s32.totalorder %s24, 1
      %p68 = por %p66, %p67
      %p70 = scmp.ne.s32.totalorder %s55, %s69
      %p71 = scmp.eq.s32.totalorder %s24, 0
      %p72 = por %p70, %p71
      %s74 = sadd.s32 %s73, 1
      %p77 = scmp.eq.s32.totalorder %s18, 1
      %p78 = scmp.ne.s32.totalorder %s73, %s75
      %p79 = scmp.eq.s32.totalorder %s18, 0
      %p80 = por %p78, %p79
      %p81 = scmp.ne.s32.totalorder %s73, %s75
      %p82 = scmp.eq.s32.totalorder %s23, 1
      %p83 = por %p81, %p82
      %p84 = scmp.ne.s32.totalorder %s75, %s76
      %p85 = scmp.eq.s32.totalorder %s23, 0
      %p86 = por %p84, %p85
      %p87 = scmp.ne.s32.totalorder %s75, %s76
      %p88 = scmp.eq.s32.totalorder %s24, 1
      %p89 = por %p87, %p88
      %p91 = scmp.ne.s32.totalorder %s76, %s90
      %p92 = scmp.eq.s32.totalorder %s24, 0
      %p93 = por %p91, %p92
      %s95 = sadd.s32 %s94, 1
      %p98 = scmp.eq.s32.totalorder %s18, 1
      %p99 = scmp.ne.s32.totalorder %s94, %s96
      %p100 = scmp.eq.s32.totalorder %s18, 0
      %p101 = por %p99, %p100
      %p102 = scmp.ne.s32.totalorder %s94, %s96
      %p103 = scmp.eq.s32.totalorder %s23, 1
      %p104 = por %p102, %p103
      %p105 = scmp.ne.s32.totalorder %s96, %s97
      %p106 = scmp.eq.s32.totalorder %s23, 0
      %p107 = por %p105, %p106
      %p108 = scmp.ne.s32.totalorder %s96, %s97
      %p109 = scmp.eq.s32.totalorder %s24, 1
      %p110 = por %p108, %p109
      %p112 = scmp.ne.s32.totalorder %s97, %s111
      %p113 = scmp.eq.s32.totalorder %s24, 0
      %p114 = por %p112, %p113
      %s116 = sadd.s32 %s115, 1
      %p119 = scmp.eq.s32.totalorder %s18, 1
      %p120 = scmp.ne.s32.totalorder %s115, %s117
      %p121 = scmp.eq.s32.totalorder %s18, 0
      %p122 = por %p120, %p121
      %p123 = scmp.ne.s32.totalorder %s115, %s117
      %p124 = scmp.eq.s32.totalorder %s23, 1
      %p125 = por %p123, %p124
      %p126 = scmp.ne.s32.totalorder %s117, %s118
      %p127 = scmp.eq.s32.totalorder %s23, 0
      %p128 = por %p126, %p127
      %p129 = scmp.ne.s32.totalorder %s117, %s118
      %p130 = scmp.eq.s32.totalorder %s24, 1
      %p131 = por %p129, %p130
      %p133 = scmp.ne.s32.totalorder %s118, %s132
      %p134 = scmp.eq.s32.totalorder %s24, 0
      %p135 = por %p133, %p134
      %s136 = ssub.s32 %s18, %s25
      %p137 = scmp.eq.s32.totalorder %s136, 0
      %s139 = sadd.s32 %s138, 1
      %s140 = scalar_select %p137, %s138, %s139
      %p143 = pneg %p137
      %p144 = scmp.eq.s32.totalorder %s18, 1
      %p145 = por %p143, %p144
      %p146 = scmp.ne.s32.totalorder %s138, %s141
      %p147 = scmp.eq.s32.totalorder %s18, 0
      %p148 = por %p146, %p147
      %p149 = scmp.ne.s32.totalorder %s138, %s141
      %p150 = scmp.eq.s32.totalorder %s23, 1
      %p151 = por %p149, %p150
      %p152 = scmp.ne.s32.totalorder %s141, %s142
      %p153 = scmp.eq.s32.totalorder %s23, 0
      %p154 = por %p152, %p153
      %p155 = scmp.ne.s32.totalorder %s141, %s142
      %p156 = scmp.eq.s32.totalorder %s24, 1
      %p157 = por %p155, %p156
      %p159 = scmp.ne.s32.totalorder %s142, %s158
      %p160 = scmp.eq.s32.totalorder %s24, 0
      %p161 = por %p159, %p160
      %p162 = scmp.le.s32.totalorder 1, %s18
      %p163 = scmp.lt.s32.totalorder %s18, 3
      %p164 = pnand %p162, %p163
      %p165 = pneg %p164
      // Predicated region
      $region9: #{tpu_custom_call.1} parent=5 // pred_check
        _
      $region10: #{tpu_custom_call.1} parent=5 // pred_check_branch
        %167 = sbr.rel (%p164) target = $region12
      $region11: #{tpu_custom_call.1} parent=5 // pred_region
        %s168 = ssub.s32 %s18, 1
        // Predicated region
        $region13: #{tpu_custom_call.1} parent=11 // pred_check
          %p169 = pneg %p65
        $region14: #{tpu_custom_call.1} parent=11 // pred_check_branch
          %171 = sbr.rel (%p169) target = $region16
        $region15: #{tpu_custom_call.1} parent=11 // pred_region
          %s173 = ssub.s32 3072, 3072
          %174 = vsyncadd [#allocation6], %s173
          %s175 = sshll.u32 [#allocation5], 4
          %s176 = int_to_ptr.vmem [resolvable:$true] %s175
          %181 = dma.hbm_to_vmem [thread:$0]  %s1, 3072, %s176, [#allocation6], 256, 256, 16
        $region16: #{tpu_custom_call.1} parent=11 // pred_fallthru
          _
        // Predicated region
        $region17: #{tpu_custom_call.1} parent=11 // pred_check
          %p182 = pneg %p86
        $region18: #{tpu_custom_call.1} parent=11 // pred_check_branch
          %184 = sbr.rel (%p182) target = $region20
        $region19: #{tpu_custom_call.1} parent=11 // pred_region
          _
        $region20: #{tpu_custom_call.1} parent=11 // pred_fallthru
          _
        // Predicated region
        $region21: #{tpu_custom_call.1} parent=11 // pred_check
          %p185 = pneg %p107
        $region22: #{tpu_custom_call.1} parent=11 // pred_check_branch
          %187 = sbr.rel (%p185) target = $region24
        $region23: #{tpu_custom_call.1} parent=11 // pred_region
          _
        $region24: #{tpu_custom_call.1} parent=11 // pred_fallthru
          _
        // Predicated region
        $region25: #{tpu_custom_call.1} parent=11 // pred_check
          %p188 = pneg %p128
        $region26: #{tpu_custom_call.1} parent=11 // pred_check_branch
          %190 = sbr.rel (%p188) target = $region28
        $region27: #{tpu_custom_call.1} parent=11 // pred_region
          _
        $region28: #{tpu_custom_call.1} parent=11 // pred_fallthru
          _
      $region12: #{tpu_custom_call.1} parent=5 // pred_fallthru
        _
      %p191 = scmp.lt.s32.totalorder %s18, 2
      // Predicated region
      $region29: #{tpu_custom_call.1} parent=5 // pred_check
        %p192 = pneg %p191
      $region30: #{tpu_custom_call.1} parent=5 // pred_check_branch
        %194 = sbr.rel (%p192) target = $region32
      $region31: #{tpu_custom_call.1} parent=5 // pred_region
        // Predicated region
        $region33: #{tpu_custom_call.1} parent=31 // pred_check
          %p195 = pneg %p38
        $region34: #{tpu_custom_call.1} parent=31 // pred_check_branch
          %197 = sbr.rel (%p195) target = $region36
        $region35: #{tpu_custom_call.1} parent=31 // pred_region
          %s198 = sand.u32 %s28, 1
          %s199 = scalar_lea.sflag [#allocation3], %s198
          %s200 = sand.u32 %s28, 1
          %s201 = smul.addr %s200, 256
          %s202 = scalar_lea.vmem [#allocation2], %s201
          %s203 = smul.u32 16, %s18
          %s205 = ssub.s32 4096, 4096
          %206 = vsyncadd %s199, %s205
          %s207 = smul.addr %s203, 2
          %s208 = smul.addr %s207, 128
          %s209 = scalar_lea.hbm %s0, %s208
          %s210 = sshll.u32 %s202, 4
          %s211 = int_to_ptr.vmem [resolvable:$true] %s210
          %216 = dma.hbm_to_vmem [thread:$0]  %s209, 4096, %s211, %s199, 256, 256, 16
        $region36: #{tpu_custom_call.1} parent=31 // pred_fallthru
          _
      $region32: #{tpu_custom_call.1} parent=5 // pred_fallthru
        _
      %p217 = scmp.le.s32.totalorder 1, %s18
      %p218 = scmp.lt.s32.totalorder %s18, 3
      %p219 = pnand %p217, %p218
      %p220 = pneg %p219
      // Predicated region
      $region37: #{tpu_custom_call.1} parent=5 // pred_check
        _
      $region38: #{tpu_custom_call.1} parent=5 // pred_check_branch
        %222 = sbr.rel (%p219) target = $region40
      $region39: #{tpu_custom_call.1} parent=5 // pred_region
        %s223 = ssub.s32 %s18, 1
        %s224 = sand.u32 %s31, 1
        %s225 = scalar_lea.sflag [#allocation3], %s224
        %s226 = sand.u32 %s31, 1
        %s227 = smul.addr %s226, 256
        %s228 = scalar_lea.vmem [#allocation2], %s227
        // Predicated region
        $region41: #{tpu_custom_call.1} parent=39 // pred_check
          %p229 = pneg %p44
        $region42: #{tpu_custom_call.1} parent=39 // pred_check_branch
          %231 = sbr.rel (%p229) target = $region44
        $region43: #{tpu_custom_call.1} parent=39 // pred_region
          %232 = dma.done %s225, 4096
        $region44: #{tpu_custom_call.1} parent=39 // pred_fallthru
          _
        // Predicated region
        $region45: #{tpu_custom_call.1} parent=39 // pred_check
          %p233 = pneg %p65
        $region46: #{tpu_custom_call.1} parent=39 // pred_check_branch
          %235 = sbr.rel (%p233) target = $region48
        $region47: #{tpu_custom_call.1} parent=39 // pred_region
          %236 = dma.done [#allocation6], 3072
        $region48: #{tpu_custom_call.1} parent=39 // pred_fallthru
          _
        %s237 = sand.u32 %s31, 1
        %s238 = scalar_lea.sflag [#allocation3], %s237
        %s239 = sand.u32 %s31, 1
        %s240 = smul.addr %s239, 256
        %s241 = scalar_lea.vmem [#allocation2], %s240
        %p242 = pneg %p44
        %p243 = pneg %p41
        %p244 = pneg %p65
        %p245 = pneg %p62
        %p246 = pneg %p86
        %p247 = pneg %p83
        %p248 = pneg %p107
        %p249 = pneg %p104
        %p250 = pneg %p128
        %p251 = pneg %p125
        %p252 = pneg %p154
        %p253 = pneg %p151
        %s254 = sand.u32 %s141, 1
        %s255 = scalar_lea.sflag [#allocation4], %s254
        %s256 = sand.u32 %s141, 1
        %s257 = smul.addr %s256, 256
        %s258 = scalar_lea.vmem [#allocation7], %s257
        %s259 = smul.u32 16, %s23
        %s260 = smul.u32 16, %s23
        %v261 = vld [vmem:[%s228] sm:$0xff]
        %v262 = vld [vmem:[%s228 + $0x8] sm:$0xff]
        %v263 = vld [vmem:[%s228 + $0x10] sm:$0xff]
        %v264 = vld [vmem:[%s228 + $0x18] sm:$0xff]
        %v265 = vld [vmem:[%s228 + $0x20] sm:$0xff]
        %v266 = vld [vmem:[%s228 + $0x28] sm:$0xff]
        %v267 = vld [vmem:[%s228 + $0x30] sm:$0xff]
        %v268 = vld [vmem:[%s228 + $0x38] sm:$0xff]
        %v269 = vld [vmem:[%s228 + $0x40] sm:$0xff]
        %v270 = vld [vmem:[%s228 + $0x48] sm:$0xff]
        %v271 = vld [vmem:[%s228 + $0x50] sm:$0xff]
        %v272 = vld [vmem:[%s228 + $0x58] sm:$0xff]
        %v273 = vld [vmem:[%s228 + $0x60] sm:$0xff]
        %v274 = vld [vmem:[%s228 + $0x68] sm:$0xff]
        %v275 = vld [vmem:[%s228 + $0x70] sm:$0xff]
        %v276 = vld [vmem:[%s228 + $0x78] sm:$0xff]
        %v277 = vld [vmem:[%s228 + $0x80] sm:$0xff]
        %v278 = vld [vmem:[%s228 + $0x88] sm:$0xff]
        %v279 = vld [vmem:[%s228 + $0x90] sm:$0xff]
        %v280 = vld [vmem:[%s228 + $0x98] sm:$0xff]
        %v281 = vld [vmem:[%s228 + $0xa0] sm:$0xff]
        %v282 = vld [vmem:[%s228 + $0xa8] sm:$0xff]
        %v283 = vld [vmem:[%s228 + $0xb0] sm:$0xff]
        %v284 = vld [vmem:[%s228 + $0xb8] sm:$0xff]
        %v285 = vld [vmem:[%s228 + $0xc0] sm:$0xff]
        %v286 = vld [vmem:[%s228 + $0xc8] sm:$0xff]
        %v287 = vld [vmem:[%s228 + $0xd0] sm:$0xff]
        %v288 = vld [vmem:[%s228 + $0xd8] sm:$0xff]
        %v289 = vld [vmem:[%s228 + $0xe0] sm:$0xff]
        %v290 = vld [vmem:[%s228 + $0xe8] sm:$0xff]
        %v291 = vld [vmem:[%s228 + $0xf0] sm:$0xff]
        %v292 = vld [vmem:[%s228 + $0xf8] sm:$0xff]
        %v293 = vld [vmem:[#allocation5] sm:$0xff]
        %v294 = vld [vmem:[#allocation5 + $0x8] sm:$0xff]
        %v295 = vld [vmem:[#allocation5 + $0x10] sm:$0xff]
        %v296 = vld [vmem:[#allocation5 + $0x18] sm:$0xff]
        %v297 = vld [vmem:[#allocation5 + $0x20] sm:$0xff]
        %v298 = vld [vmem:[#allocation5 + $0x28] sm:$0xff]
        %v299 = vld [vmem:[#allocation5 + $0x30] sm:$0xff]
        %v300 = vld [vmem:[#allocation5 + $0x38] sm:$0xff]
        %v301 = vld [vmem:[#allocation5 + $0x40] sm:$0xff]
        %v302 = vld [vmem:[#allocation5 + $0x48] sm:$0xff]
        %v303 = vld [vmem:[#allocation5 + $0x50] sm:$0xff]
        %v304 = vld [vmem:[#allocation5 + $0x58] sm:$0xff]
        %v305 = vld [vmem:[#allocation5 + $0x60] sm:$0xff]
        %v306 = vld [vmem:[#allocation5 + $0x68] sm:$0xff]
        %v307 = vld [vmem:[#allocation5 + $0x70] sm:$0xff]
        %v308 = vld [vmem:[#allocation5 + $0x78] sm:$0xff]
        %v309 = vld [vmem:[#allocation5 + $0x80] sm:$0xff]
        %v310 = vld [vmem:[#allocation5 + $0x88] sm:$0xff]
        %v311 = vld [vmem:[#allocation5 + $0x90] sm:$0xff]
        %v312 = vld [vmem:[#allocation5 + $0x98] sm:$0xff]
        %v313 = vld [vmem:[#allocation5 + $0xa0] sm:$0xff]
        %v314 = vld [vmem:[#allocation5 + $0xa8] sm:$0xff]
        %v315 = vld [vmem:[#allocation5 + $0xb0] sm:$0xff]
        %v316 = vld [vmem:[#allocation5 + $0xb8] sm:$0xff]
        %v317 = vld [vmem:[%s2] sm:$0xff]
        %v318 = vld [vmem:[%s2 + $0x8] sm:$0xff]
        %v319 = vld [vmem:[%s2 + $0x10] sm:$0xff]
        %v320 = vld [vmem:[%s2 + $0x18] sm:$0xff]
        %v321 = vld [vmem:[%s2 + $0x20] sm:$0xff]
        %v322 = vld [vmem:[%s2 + $0x28] sm:$0xff]
        %v323 = vld [vmem:[%s2 + $0x30] sm:$0xff]
        %v324 = vld [vmem:[%s2 + $0x38] sm:$0xff]
        %v325 = vld [vmem:[%s2 + $0x40] sm:$0xff]
        %v326 = vld [vmem:[%s2 + $0x48] sm:$0xff]
        %v327 = vld [vmem:[%s2 + $0x50] sm:$0xff]
        %v328 = vld [vmem:[%s2 + $0x58] sm:$0xff]
        %330 = vset.pattern.permute.xlu0 0
        %331 = vperm.xlu0 %330, %v317
        %v332 = vpop.permute.xlu0 %331
        %335 = vset.pattern.permute.xlu0 0
        %336 = vperm.xlu0 %335, %v318
        %v337 = vpop.permute.xlu0 %336
        %340 = vset.pattern.permute.xlu0 0
        %341 = vperm.xlu0 %340, %v319
        %v342 = vpop.permute.xlu0 %341
        %345 = vset.pattern.permute.xlu0 0
        %346 = vperm.xlu0 %345, %v320
        %v347 = vpop.permute.xlu0 %346
        %350 = vset.pattern.permute.xlu0 0
        %351 = vperm.xlu0 %350, %v321
        %v352 = vpop.permute.xlu0 %351
        %355 = vset.pattern.permute.xlu0 0
        %356 = vperm.xlu0 %355, %v322
        %v357 = vpop.permute.xlu0 %356
        %360 = vset.pattern.permute.xlu0 0
        %361 = vperm.xlu0 %360, %v323
        %v362 = vpop.permute.xlu0 %361
        %365 = vset.pattern.permute.xlu0 0
        %366 = vperm.xlu0 %365, %v324
        %v367 = vpop.permute.xlu0 %366
        %370 = vset.pattern.permute.xlu0 0
        %371 = vperm.xlu0 %370, %v325
        %v372 = vpop.permute.xlu0 %371
        %375 = vset.pattern.permute.xlu0 0
        %376 = vperm.xlu0 %375, %v326
        %v377 = vpop.permute.xlu0 %376
        %380 = vset.pattern.permute.xlu0 0
        %381 = vperm.xlu0 %380, %v327
        %v382 = vpop.permute.xlu0 %381
        %385 = vset.pattern.permute.xlu0 0
        %386 = vperm.xlu0 %385, %v328
        %v387 = vpop.permute.xlu0 %386
        %389 = vmatprep.subr.mxu0 %v292
        %390 = vmatpush1.xpose.msra.mxu0 %v291
        %391 = vmatprep.subr.mxu0 %v290
        %392 = vmatpush1.xpose.msra.mxu0 %v289
        %393 = vmatprep.subr.mxu0 %v288
        %394 = vmatpush1.xpose.msra.mxu0 %v287
        %395 = vmatprep.subr.mxu0 %v286
        %396 = vmatpush1.xpose.msra.mxu0 %v285
        %397 = vmatprep.subr.mxu0 %v284
        %398 = vmatpush1.xpose.msra.mxu0 %v283
        %399 = vmatprep.subr.mxu0 %v282
        %400 = vmatpush1.xpose.msra.mxu0 %v281
        %401 = vmatprep.subr.mxu0 %v280
        %402 = vmatpush1.xpose.msra.mxu0 %v279
        %403 = vmatprep.subr.mxu0 %v278
        %404 = vmatpush1.xpose.msra.mxu0 %v277
        %405 = vmatprep.subr.mxu0 %v276
        %406 = vmatpush1.xpose.msra.mxu0 %v275
        %407 = vmatprep.subr.mxu0 %v274
        %408 = vmatpush1.xpose.msra.mxu0 %v273
        %409 = vmatprep.subr.mxu0 %v272
        %410 = vmatpush1.xpose.msra.mxu0 %v271
        %411 = vmatprep.subr.mxu0 %v270
        %412 = vmatpush1.xpose.msra.mxu0 %v269
        %413 = vmatprep.subr.mxu0 %v268
        %414 = vmatpush1.xpose.msra.mxu0 %v267
        %415 = vmatprep.subr.mxu0 %v266
        %416 = vmatpush1.xpose.msra.mxu0 %v265
        %417 = vmatprep.subr.mxu0 %v264
        %418 = vmatpush1.xpose.msra.mxu0 %v263
        %419 = vmatprep.subr.mxu0 %v262
        %420 = vmatpush1.xpose.msra.mxu0 %v261
        %421 = vmatprep.subr.mxu0 0.0
        %422 = vmatpush2.xpose.msra.mxu0 0.0
        %423 = vmatprep.subr.mxu0 0.0
        %424 = vmatpush2.xpose.msra.mxu0 0.0
        %425 = vmatprep.subr.mxu0 0.0
        %426 = vmatpush2.xpose.msra.mxu0 0.0
        %427 = vmatprep.subr.mxu0 0.0
        %428 = vmatpush2.xpose.msra.mxu0 0.0
        %429 = vmatprep.subr.mxu0 0.0
        %430 = vmatpush2.xpose.msra.mxu0 0.0
        %431 = vmatprep.subr.mxu0 0.0
        %432 = vmatpush2.xpose.msra.mxu0 0.0
        %433 = vmatprep.subr.mxu0 0.0
        %434 = vmatpush2.xpose.msra.mxu0 0.0
        %435 = vmatprep.subr.mxu0 0.0
        %436 = vmatpush2.xpose.msra.mxu0 0.0
        %437 = vmatprep.subr.mxu0 0.0
        %438 = vmatpush2.xpose.msra.mxu0 0.0
        %439 = vmatprep.subr.mxu0 0.0
        %440 = vmatpush2.xpose.msra.mxu0 0.0
        %441 = vmatprep.subr.mxu0 0.0
        %442 = vmatpush2.xpose.msra.mxu0 0.0
        %443 = vmatprep.subr.mxu0 0.0
        %444 = vmatpush2.xpose.msra.mxu0 0.0
        %445 = vmatprep.subr.mxu0 0.0
        %446 = vmatpush2.xpose.msra.mxu0 0.0
        %447 = vmatprep.subr.mxu0 0.0
        %448 = vmatpush2.xpose.msra.mxu0 0.0
        %449 = vmatprep.subr.mxu0 0.0
        %450 = vmatpush2.xpose.msra.mxu0 0.0
        %451 = vmatprep.subr.mxu0 0.0
        %452 = vmatpush2.xpose.msra.mxu0 0.0
        %453 = vmatprep.mubr.f32.mxu0 %v294
        %454 = vmatmul.mubr.f32.gmra.mxu0 %v293
        %v455 = vpop.f32.mrf.mxu0
        %v456 = vadd.f32 %v332, %v455
        %v457 = vpop.f32.mrf.mxu0
        %458 = vmatprep.mubr.f32.mxu0 %v296
        %459 = vmatmul.mubr.f32.gmra.mxu0 %v295
        %v460 = vpop.f32.mrf.mxu0
        %v461 = vadd.f32 %v337, %v460
        %v462 = vpop.f32.mrf.mxu0
        %463 = vmatprep.mubr.f32.mxu0 %v298
        %464 = vmatmul.mubr.f32.gmra.mxu0 %v297
        %v465 = vpop.f32.mrf.mxu0
        %v466 = vadd.f32 %v342, %v465
        %v467 = vpop.f32.mrf.mxu0
        %468 = vmatprep.mubr.f32.mxu0 %v300
        %469 = vmatmul.mubr.f32.gmra.mxu0 %v299
        %v470 = vpop.f32.mrf.mxu0
        %v471 = vadd.f32 %v347, %v470
        %v472 = vpop.f32.mrf.mxu0
        %473 = vmatprep.mubr.f32.mxu0 %v302
        %474 = vmatmul.mubr.f32.gmra.mxu0 %v301
        %v475 = vpop.f32.mrf.mxu0
        %v476 = vadd.f32 %v352, %v475
        %v477 = vpop.f32.mrf.mxu0
        %478 = vmatprep.mubr.f32.mxu0 %v304
        %479 = vmatmul.mubr.f32.gmra.mxu0 %v303
        %v480 = vpop.f32.mrf.mxu0
        %v481 = vadd.f32 %v357, %v480
        %v482 = vpop.f32.mrf.mxu0
        %483 = vmatprep.mubr.f32.mxu0 %v306
        %484 = vmatmul.mubr.f32.gmra.mxu0 %v305
        %v485 = vpop.f32.mrf.mxu0
        %v486 = vadd.f32 %v362, %v485
        %v487 = vpop.f32.mrf.mxu0
        %488 = vmatprep.mubr.f32.mxu0 %v308
        %489 = vmatmul.mubr.f32.gmra.mxu0 %v307
        %v490 = vpop.f32.mrf.mxu0
        %v491 = vadd.f32 %v367, %v490
        %v492 = vpop.f32.mrf.mxu0
        %493 = vmatprep.mubr.f32.mxu0 %v310
        %494 = vmatmul.mubr.f32.gmra.mxu0 %v309
        %v495 = vpop.f32.mrf.mxu0
        %v496 = vadd.f32 %v372, %v495
        %v497 = vpop.f32.mrf.mxu0
        %498 = vmatprep.mubr.f32.mxu0 %v312
        %499 = vmatmul.mubr.f32.gmra.mxu0 %v311
        %v500 = vpop.f32.mrf.mxu0
        %v501 = vadd.f32 %v377, %v500
        %v502 = vpop.f32.mrf.mxu0
        %503 = vmatprep.mubr.f32.mxu0 %v314
        %504 = vmatmul.mubr.f32.gmra.mxu0 %v313
        %v505 = vpop.f32.mrf.mxu0
        %v506 = vadd.f32 %v382, %v505
        %v507 = vpop.f32.mrf.mxu0
        %508 = vmatprep.mubr.f32.mxu0 %v316
        %509 = vmatmul.mubr.f32.gmra.mxu0 %v315
        %v510 = vpop.f32.mrf.mxu0
        %v511 = vadd.f32 %v387, %v510
        %v512 = vpop.f32.mrf.mxu0
        %513 = vdwg.mxu0
        %v514 = vmax.f32 %v476, %v481
        %v515 = vmax.f32 %v486, %v491
        %v516 = vmax.f32 %v514, %v515
        %v517 = vrot.slane %v516, 4
        %v518 = vmax.f32 %v516, %v517
        %v519 = vrot.slane %v518, 2
        %v520 = vmax.f32 %v518, %v519
        %v521 = vrot.slane %v520, 1
        %v522 = vmax.f32 %v520, %v521
        %v523 = vmin.f32 %v476, %v481
        %v524 = vmin.f32 %v486, %v491
        %v525 = vmin.f32 %v523, %v524
        %v526 = vrot.slane %v525, 4
        %v527 = vmin.f32 %v525, %v526
        %v528 = vrot.slane %v527, 2
        %v529 = vmin.f32 %v527, %v528
        %v530 = vrot.slane %v529, 1
        %v531 = vmin.f32 %v529, %v530
        %vm532 = vcmp.ge.f32.partialorder %v496, 0.0
        %vm533 = vcmp.ge.f32.partialorder %v501, 0.0
        %vm534 = vcmp.ge.f32.partialorder %v506, 0.0
        %vm535 = vcmp.ge.f32.partialorder %v511, 0.0
        %v536 = vsel %vm532, %v522, %v531
        %v537 = vsel %vm533, %v522, %v531
        %v538 = vsel %vm534, %v522, %v531
        %v539 = vsel %vm535, %v522, %v531
        %v540 = vmul.f32 %v496, %v536
        %v541 = vmul.f32 %v501, %v537
        %v542 = vmul.f32 %v506, %v538
        %v543 = vmul.f32 %v511, %v539
        %v545 = vcombine.high %v476, %v476
        %v547 = vunpack.c.l.s4 1966171168
        %v548 = vunpack.c.0.s8 %v547
        %v549 = vlaneseq
        %v550 = vshrl.u32 %v549, 7
        %v551 = vsub.s32 %v548, %v550
        %v552 = vrot.slane %v476, %v551
        %v554 = vunpack.c.l.s4 1966171168
        %v555 = vunpack.c.0.s8 %v554
        %v556 = vlaneseq
        %v557 = vshrl.u32 %v556, 7
        %v558 = vsub.s32 %v555, %v557
        %v559 = vrot.slane %v545, %v558
        %v560 = vcombine.high %v552, %v552
        %v561 = vcombine.high %v559, %v559
        %v563 = vunpack.c.l.s4 1966171168
        %v564 = vunpack.c.0.s8 %v563
        %v565 = vlaneseq
        %v566 = vshrl.u32 %v565, 7
        %v567 = vsub.s32 %v564, %v566
        %v568 = vrot.slane %v552, %v567
        %v570 = vunpack.c.l.s4 1966171168
        %v571 = vunpack.c.0.s8 %v570
        %v572 = vlaneseq
        %v573 = vshrl.u32 %v572, 7
        %v574 = vsub.s32 %v571, %v573
        %v575 = vrot.slane %v559, %v574
        %v577 = vunpack.c.l.s4 1966171168
        %v578 = vunpack.c.0.s8 %v577
        %v579 = vlaneseq
        %v580 = vshrl.u32 %v579, 7
        %v581 = vsub.s32 %v578, %v580
        %v582 = vrot.slane %v560, %v581
        %v584 = vunpack.c.l.s4 1966171168
        %v585 = vunpack.c.0.s8 %v584
        %v586 = vlaneseq
        %v587 = vshrl.u32 %v586, 7
        %v588 = vsub.s32 %v585, %v587
        %v589 = vrot.slane %v561, %v588
        %v590 = vcombine.high %v568, %v568
        %v591 = vcombine.high %v575, %v575
        %v592 = vcombine.high %v582, %v582
        %v593 = vcombine.high %v589, %v589
        %v594 = vlaneseq
        %v595 = vshrl.u32 %v594, 7
        %v596 = vsub.s32 0, %v595
        %v597 = vrot.slane %v568, %v596
        %v598 = vlaneseq
        %v599 = vshrl.u32 %v598, 7
        %v600 = vsub.s32 0, %v599
        %v601 = vrot.slane %v582, %v600
        %v602 = vlaneseq
        %v603 = vshrl.u32 %v602, 7
        %v604 = vsub.s32 0, %v603
        %v605 = vrot.slane %v590, %v604
        %v606 = vlaneseq
        %v607 = vshrl.u32 %v606, 7
        %v608 = vsub.s32 0, %v607
        %v609 = vrot.slane %v592, %v608
        %v610 = vlaneseq
        %v611 = vshrl.u32 %v610, 7
        %v612 = vsub.s32 0, %v611
        %v613 = vrot.slane %v575, %v612
        %v614 = vlaneseq
        %v615 = vshrl.u32 %v614, 7
        %v616 = vsub.s32 0, %v615
        %v617 = vrot.slane %v589, %v616
        %v618 = vlaneseq
        %v619 = vshrl.u32 %v618, 7
        %v620 = vsub.s32 0, %v619
        %v621 = vrot.slane %v591, %v620
        %v622 = vlaneseq
        %v623 = vshrl.u32 %v622, 7
        %v624 = vsub.s32 0, %v623
        %v625 = vrot.slane %v593, %v624
        %v634 = vmul.f32 %v597, %v496
        %v635 = vmul.f32 %v597, %v501
        %v636 = vmul.f32 %v597, %v506
        %v637 = vmul.f32 %v597, %v511
        %v638 = vmul.f32 %v601, %v496
        %v639 = vmul.f32 %v601, %v501
        %v640 = vmul.f32 %v601, %v506
        %v641 = vmul.f32 %v601, %v511
        %v642 = vmul.f32 %v605, %v496
        %v643 = vmul.f32 %v605, %v501
        %v644 = vmul.f32 %v605, %v506
        %v645 = vmul.f32 %v605, %v511
        %v646 = vmul.f32 %v609, %v496
        %v647 = vmul.f32 %v609, %v501
        %v648 = vmul.f32 %v609, %v506
        %v649 = vmul.f32 %v609, %v511
        %v650 = vmul.f32 %v613, %v496
        %v651 = vmul.f32 %v613, %v501
        %v652 = vmul.f32 %v613, %v506
        %v653 = vmul.f32 %v613, %v511
        %v654 = vmul.f32 %v617, %v496
        %v655 = vmul.f32 %v617, %v501
        %v656 = vmul.f32 %v617, %v506
        %v657 = vmul.f32 %v617, %v511
        %v658 = vmul.f32 %v621, %v496
        %v659 = vmul.f32 %v621, %v501
        %v660 = vmul.f32 %v621, %v506
        %v661 = vmul.f32 %v621, %v511
        %v662 = vmul.f32 %v625, %v496
        %v663 = vmul.f32 %v625, %v501
        %v664 = vmul.f32 %v625, %v506
        %v665 = vmul.f32 %v625, %v511
        %v666 = vsub.f32 %v634, %v540
        %v667 = vsub.f32 %v635, %v541
        %v668 = vsub.f32 %v636, %v542
        %v669 = vsub.f32 %v637, %v543
        %v670 = vsub.f32 %v638, %v540
        %v671 = vsub.f32 %v639, %v541
        %v672 = vsub.f32 %v640, %v542
        %v673 = vsub.f32 %v641, %v543
        %v674 = vsub.f32 %v642, %v540
        %v675 = vsub.f32 %v643, %v541
        %v676 = vsub.f32 %v644, %v542
        %v677 = vsub.f32 %v645, %v543
        %v678 = vsub.f32 %v646, %v540
        %v679 = vsub.f32 %v647, %v541
        %v680 = vsub.f32 %v648, %v542
        %v681 = vsub.f32 %v649, %v543
        %v682 = vsub.f32 %v650, %v540
        %v683 = vsub.f32 %v651, %v541
        %v684 = vsub.f32 %v652, %v542
        %v685 = vsub.f32 %v653, %v543
        %v686 = vsub.f32 %v654, %v540
        %v687 = vsub.f32 %v655, %v541
        %v688 = vsub.f32 %v656, %v542
        %v689 = vsub.f32 %v657, %v543
        %v690 = vsub.f32 %v658, %v540
        %v691 = vsub.f32 %v659, %v541
        %v692 = vsub.f32 %v660, %v542
        %v693 = vsub.f32 %v661, %v543
        %v694 = vsub.f32 %v662, %v540
        %v695 = vsub.f32 %v663, %v541
        %v696 = vsub.f32 %v664, %v542
        %v697 = vsub.f32 %v665, %v543
        %v698 = vmul.f32 %v666, 1.442695
        %v699 = vpow.pop %v698
        %v700 = vmul.f32 %v667, 1.442695
        %v701 = vpow.pop %v700
        %v702 = vmul.f32 %v668, 1.442695
        %v703 = vpow.pop %v702
        %v704 = vmul.f32 %v669, 1.442695
        %v705 = vpow.pop %v704
        %v706 = vmul.f32 %v670, 1.442695
        %v707 = vpow.pop %v706
        %v708 = vmul.f32 %v671, 1.442695
        %v709 = vpow.pop %v708
        %v710 = vmul.f32 %v672, 1.442695
        %v711 = vpow.pop %v710
        %v712 = vmul.f32 %v673, 1.442695
        %v713 = vpow.pop %v712
        %v714 = vmul.f32 %v674, 1.442695
        %v715 = vpow.pop %v714
        %v716 = vmul.f32 %v675, 1.442695
        %v717 = vpow.pop %v716
        %v718 = vmul.f32 %v676, 1.442695
        %v719 = vpow.pop %v718
        %v720 = vmul.f32 %v677, 1.442695
        %v721 = vpow.pop %v720
        %v722 = vmul.f32 %v678, 1.442695
        %v723 = vpow.pop %v722
        %v724 = vmul.f32 %v679, 1.442695
        %v725 = vpow.pop %v724
        %v726 = vmul.f32 %v680, 1.442695
        %v727 = vpow.pop %v726
        %v728 = vmul.f32 %v681, 1.442695
        %v729 = vpow.pop %v728
        %v730 = vmul.f32 %v682, 1.442695
        %v731 = vpow.pop %v730
        %v732 = vmul.f32 %v683, 1.442695
        %v733 = vpow.pop %v732
        %v734 = vmul.f32 %v684, 1.442695
        %v735 = vpow.pop %v734
        %v736 = vmul.f32 %v685, 1.442695
        %v737 = vpow.pop %v736
        %v738 = vmul.f32 %v686, 1.442695
        %v739 = vpow.pop %v738
        %v740 = vmul.f32 %v687, 1.442695
        %v741 = vpow.pop %v740
        %v742 = vmul.f32 %v688, 1.442695
        %v743 = vpow.pop %v742
        %v744 = vmul.f32 %v689, 1.442695
        %v745 = vpow.pop %v744
        %v746 = vmul.f32 %v690, 1.442695
        %v747 = vpow.pop %v746
        %v748 = vmul.f32 %v691, 1.442695
        %v749 = vpow.pop %v748
        %v750 = vmul.f32 %v692, 1.442695
        %v751 = vpow.pop %v750
        %v752 = vmul.f32 %v693, 1.442695
        %v753 = vpow.pop %v752
        %v754 = vmul.f32 %v694, 1.442695
        %v755 = vpow.pop %v754
        %v756 = vmul.f32 %v695, 1.442695
        %v757 = vpow.pop %v756
        %v758 = vmul.f32 %v696, 1.442695
        %v759 = vpow.pop %v758
        %v760 = vmul.f32 %v697, 1.442695
        %v761 = vpow.pop %v760
        %v763 = vcombine.high %v456, %v456
        %v765 = vunpack.c.l.s4 1966171168
        %v766 = vunpack.c.0.s8 %v765
        %v767 = vlaneseq
        %v768 = vshrl.u32 %v767, 7
        %v769 = vsub.s32 %v766, %v768
        %v770 = vrot.slane %v456, %v769
        %v772 = vunpack.c.l.s4 1966171168
        %v773 = vunpack.c.0.s8 %v772
        %v774 = vlaneseq
        %v775 = vshrl.u32 %v774, 7
        %v776 = vsub.s32 %v773, %v775
        %v777 = vrot.slane %v763, %v776
        %v778 = vcombine.high %v770, %v770
        %v779 = vcombine.high %v777, %v777
        %v781 = vunpack.c.l.s4 1966171168
        %v782 = vunpack.c.0.s8 %v781
        %v783 = vlaneseq
        %v784 = vshrl.u32 %v783, 7
        %v785 = vsub.s32 %v782, %v784
        %v786 = vrot.slane %v770, %v785
        %v788 = vunpack.c.l.s4 1966171168
        %v789 = vunpack.c.0.s8 %v788
        %v790 = vlaneseq
        %v791 = vshrl.u32 %v790, 7
        %v792 = vsub.s32 %v789, %v791
        %v793 = vrot.slane %v777, %v792
        %v795 = vunpack.c.l.s4 1966171168
        %v796 = vunpack.c.0.s8 %v795
        %v797 = vlaneseq
        %v798 = vshrl.u32 %v797, 7
        %v799 = vsub.s32 %v796, %v798
        %v800 = vrot.slane %v778, %v799
        %v802 = vunpack.c.l.s4 1966171168
        %v803 = vunpack.c.0.s8 %v802
        %v804 = vlaneseq
        %v805 = vshrl.u32 %v804, 7
        %v806 = vsub.s32 %v803, %v805
        %v807 = vrot.slane %v779, %v806
        %v808 = vcombine.high %v786, %v786
        %v809 = vcombine.high %v793, %v793
        %v810 = vcombine.high %v800, %v800
        %v811 = vcombine.high %v807, %v807
        %v812 = vlaneseq
        %v813 = vshrl.u32 %v812, 7
        %v814 = vsub.s32 0, %v813
        %v815 = vrot.slane %v786, %v814
        %v816 = vlaneseq
        %v817 = vshrl.u32 %v816, 7
        %v818 = vsub.s32 0, %v817
        %v819 = vrot.slane %v800, %v818
        %v820 = vlaneseq
        %v821 = vshrl.u32 %v820, 7
        %v822 = vsub.s32 0, %v821
        %v823 = vrot.slane %v808, %v822
        %v824 = vlaneseq
        %v825 = vshrl.u32 %v824, 7
        %v826 = vsub.s32 0, %v825
        %v827 = vrot.slane %v810, %v826
        %v828 = vlaneseq
        %v829 = vshrl.u32 %v828, 7
        %v830 = vsub.s32 0, %v829
        %v831 = vrot.slane %v793, %v830
        %v832 = vlaneseq
        %v833 = vshrl.u32 %v832, 7
        %v834 = vsub.s32 0, %v833
        %v835 = vrot.slane %v807, %v834
        %v836 = vlaneseq
        %v837 = vshrl.u32 %v836, 7
        %v838 = vsub.s32 0, %v837
        %v839 = vrot.slane %v809, %v838
        %v840 = vlaneseq
        %v841 = vshrl.u32 %v840, 7
        %v842 = vsub.s32 0, %v841
        %v843 = vrot.slane %v811, %v842
        %v852 = vmul.f32 %v699, %v815
        %v853 = vmul.f32 %v701, %v815
        %v854 = vmul.f32 %v703, %v815
        %v855 = vmul.f32 %v705, %v815
        %v856 = vmul.f32 %v707, %v819
        %v857 = vmul.f32 %v709, %v819
        %v858 = vmul.f32 %v711, %v819
        %v859 = vmul.f32 %v713, %v819
        %v860 = vmul.f32 %v715, %v823
        %v861 = vmul.f32 %v717, %v823
        %v862 = vmul.f32 %v719, %v823
        %v863 = vmul.f32 %v721, %v823
        %v864 = vmul.f32 %v723, %v827
        %v865 = vmul.f32 %v725, %v827
        %v866 = vmul.f32 %v727, %v827
        %v867 = vmul.f32 %v729, %v827
        %v868 = vmul.f32 %v731, %v831
        %v869 = vmul.f32 %v733, %v831
        %v870 = vmul.f32 %v735, %v831
        %v871 = vmul.f32 %v737, %v831
        %v872 = vmul.f32 %v739, %v835
        %v873 = vmul.f32 %v741, %v835
        %v874 = vmul.f32 %v743, %v835
        %v875 = vmul.f32 %v745, %v835
        %v876 = vmul.f32 %v747, %v839
        %v877 = vmul.f32 %v749, %v839
        %v878 = vmul.f32 %v751, %v839
        %v879 = vmul.f32 %v753, %v839
        %v880 = vmul.f32 %v755, %v843
        %v881 = vmul.f32 %v757, %v843
        %v882 = vmul.f32 %v759, %v843
        %v883 = vmul.f32 %v761, %v843
        %v884 = vadd.f32 %v852, %v856
        %v885 = vadd.f32 %v884, %v860
        %v886 = vadd.f32 %v885, %v864
        %v887 = vadd.f32 %v886, %v868
        %v888 = vadd.f32 %v887, %v872
        %v889 = vadd.f32 %v888, %v876
        %v890 = vadd.f32 %v889, %v880
        %v891 = vadd.f32 %v853, %v857
        %v892 = vadd.f32 %v891, %v861
        %v893 = vadd.f32 %v892, %v865
        %v894 = vadd.f32 %v893, %v869
        %v895 = vadd.f32 %v894, %v873
        %v896 = vadd.f32 %v895, %v877
        %v897 = vadd.f32 %v896, %v881
        %v898 = vadd.f32 %v854, %v858
        %v899 = vadd.f32 %v898, %v862
        %v900 = vadd.f32 %v899, %v866
        %v901 = vadd.f32 %v900, %v870
        %v902 = vadd.f32 %v901, %v874
        %v903 = vadd.f32 %v902, %v878
        %v904 = vadd.f32 %v903, %v882
        %v905 = vadd.f32 %v855, %v859
        %v906 = vadd.f32 %v905, %v863
        %v907 = vadd.f32 %v906, %v867
        %v908 = vadd.f32 %v907, %v871
        %v909 = vadd.f32 %v908, %v875
        %v910 = vadd.f32 %v909, %v879
        %v911 = vadd.f32 %v910, %v883
        %v912 = vadd.f32 %v890, 0.0
        %v913 = vadd.f32 %v897, 0.0
        %v914 = vadd.f32 %v904, 0.0
        %v915 = vadd.f32 %v911, 0.0
        %v916 = vadd.f32 %v699, %v707
        %v917 = vadd.f32 %v916, %v715
        %v918 = vadd.f32 %v917, %v723
        %v919 = vadd.f32 %v918, %v731
        %v920 = vadd.f32 %v919, %v739
        %v921 = vadd.f32 %v920, %v747
        %v922 = vadd.f32 %v921, %v755
        %v923 = vadd.f32 %v701, %v709
        %v924 = vadd.f32 %v923, %v717
        %v925 = vadd.f32 %v924, %v725
        %v926 = vadd.f32 %v925, %v733
        %v927 = vadd.f32 %v926, %v741
        %v928 = vadd.f32 %v927, %v749
        %v929 = vadd.f32 %v928, %v757
        %v930 = vadd.f32 %v703, %v711
        %v931 = vadd.f32 %v930, %v719
        %v932 = vadd.f32 %v931, %v727
        %v933 = vadd.f32 %v932, %v735
        %v934 = vadd.f32 %v933, %v743
        %v935 = vadd.f32 %v934, %v751
        %v936 = vadd.f32 %v935, %v759
        %v937 = vadd.f32 %v705, %v713
        %v938 = vadd.f32 %v937, %v721
        %v939 = vadd.f32 %v938, %v729
        %v940 = vadd.f32 %v939, %v737
        %v941 = vadd.f32 %v940, %v745
        %v942 = vadd.f32 %v941, %v753
        %v943 = vadd.f32 %v942, %v761
        %v944 = vadd.f32 %v922, 0.0
        %v945 = vadd.f32 %v929, 0.0
        %v946 = vadd.f32 %v936, 0.0
        %v947 = vadd.f32 %v943, 0.0
        %v949 = vcombine.high %v481, %v481
        %v951 = vunpack.c.l.s4 1966171168
        %v952 = vunpack.c.0.s8 %v951
        %v953 = vlaneseq
        %v954 = vshrl.u32 %v953, 7
        %v955 = vsub.s32 %v952, %v954
        %v956 = vrot.slane %v481, %v955
        %v958 = vunpack.c.l.s4 1966171168
        %v959 = vunpack.c.0.s8 %v958
        %v960 = vlaneseq
        %v961 = vshrl.u32 %v960, 7
        %v962 = vsub.s32 %v959, %v961
        %v963 = vrot.slane %v949, %v962
        %v964 = vcombine.high %v956, %v956
        %v965 = vcombine.high %v963, %v963
        %v967 = vunpack.c.l.s4 1966171168
        %v968 = vunpack.c.0.s8 %v967
        %v969 = vlaneseq
        %v970 = vshrl.u32 %v969, 7
        %v971 = vsub.s32 %v968, %v970
        %v972 = vrot.slane %v956, %v971
        %v974 = vunpack.c.l.s4 1966171168
        %v975 = vunpack.c.0.s8 %v974
        %v976 = vlaneseq
        %v977 = vshrl.u32 %v976, 7
        %v978 = vsub.s32 %v975, %v977
        %v979 = vrot.slane %v963, %v978
        %v981 = vunpack.c.l.s4 1966171168
        %v982 = vunpack.c.0.s8 %v981
        %v983 = vlaneseq
        %v984 = vshrl.u32 %v983, 7
        %v985 = vsub.s32 %v982, %v984
        %v986 = vrot.slane %v964, %v985
        %v988 = vunpack.c.l.s4 1966171168
        %v989 = vunpack.c.0.s8 %v988
        %v990 = vlaneseq
        %v991 = vshrl.u32 %v990, 7
        %v992 = vsub.s32 %v989, %v991
        %v993 = vrot.slane %v965, %v992
        %v994 = vcombine.high %v972, %v972
        %v995 = vcombine.high %v979, %v979
        %v996 = vcombine.high %v986, %v986
        %v997 = vcombine.high %v993, %v993
        %v998 = vlaneseq
        %v999 = vshrl.u32 %v998, 7
        %v1000 = vsub.s32 0, %v999
        %v1001 = vrot.slane %v972, %v1000
        %v1002 = vlaneseq
        %v1003 = vshrl.u32 %v1002, 7
        %v1004 = vsub.s32 0, %v1003
        %v1005 = vrot.slane %v986, %v1004
        %v1006 = vlaneseq
        %v1007 = vshrl.u32 %v1006, 7
        %v1008 = vsub.s32 0, %v1007
        %v1009 = vrot.slane %v994, %v1008
        %v1010 = vlaneseq
        %v1011 = vshrl.u32 %v1010, 7
        %v1012 = vsub.s32 0, %v1011
        %v1013 = vrot.slane %v996, %v1012
        %v1014 = vlaneseq
        %v1015 = vshrl.u32 %v1014, 7
        %v1016 = vsub.s32 0, %v1015
        %v1017 = vrot.slane %v979, %v1016
        %v1018 = vlaneseq
        %v1019 = vshrl.u32 %v1018, 7
        %v1020 = vsub.s32 0, %v1019
        %v1021 = vrot.slane %v993, %v1020
        %v1022 = vlaneseq
        %v1023 = vshrl.u32 %v1022, 7
        %v1024 = vsub.s32 0, %v1023
        %v1025 = vrot.slane %v995, %v1024
        %v1026 = vlaneseq
        %v1027 = vshrl.u32 %v1026, 7
        %v1028 = vsub.s32 0, %v1027
        %v1029 = vrot.slane %v997, %v1028
        %v1038 = vmul.f32 %v1001, %v496
        %v1039 = vmul.f32 %v1001, %v501
        %v1040 = vmul.f32 %v1001, %v506
        %v1041 = vmul.f32 %v1001, %v511
        %v1042 = vmul.f32 %v1005, %v496
        %v1043 = vmul.f32 %v1005, %v501
        %v1044 = vmul.f32 %v1005, %v506
        %v1045 = vmul.f32 %v1005, %v511
        %v1046 = vmul.f32 %v1009, %v496
        %v1047 = vmul.f32 %v1009, %v501
        %v1048 = vmul.f32 %v1009, %v506
        %v1049 = vmul.f32 %v1009, %v511
        %v1050 = vmul.f32 %v1013, %v496
        %v1051 = vmul.f32 %v1013, %v501
        %v1052 = vmul.f32 %v1013, %v506
        %v1053 = vmul.f32 %v1013, %v511
        %v1054 = vmul.f32 %v1017, %v496
        %v1055 = vmul.f32 %v1017, %v501
        %v1056 = vmul.f32 %v1017, %v506
        %v1057 = vmul.f32 %v1017, %v511
        %v1058 = vmul.f32 %v1021, %v496
        %v1059 = vmul.f32 %v1021, %v501
        %v1060 = vmul.f32 %v1021, %v506
        %v1061 = vmul.f32 %v1021, %v511
        %v1062 = vmul.f32 %v1025, %v496
        %v1063 = vmul.f32 %v1025, %v501
        %v1064 = vmul.f32 %v1025, %v506
        %v1065 = vmul.f32 %v1025, %v511
        %v1066 = vmul.f32 %v1029, %v496
        %v1067 = vmul.f32 %v1029, %v501
        %v1068 = vmul.f32 %v1029, %v506
        %v1069 = vmul.f32 %v1029, %v511
        %v1070 = vsub.f32 %v1038, %v540
        %v1071 = vsub.f32 %v1039, %v541
        %v1072 = vsub.f32 %v1040, %v542
        %v1073 = vsub.f32 %v1041, %v543
        %v1074 = vsub.f32 %v1042, %v540
        %v1075 = vsub.f32 %v1043, %v541
        %v1076 = vsub.f32 %v1044, %v542
        %v1077 = vsub.f32 %v1045, %v543
        %v1078 = vsub.f32 %v1046, %v540
        %v1079 = vsub.f32 %v1047, %v541
        %v1080 = vsub.f32 %v1048, %v542
        %v1081 = vsub.f32 %v1049, %v543
        %v1082 = vsub.f32 %v1050, %v540
        %v1083 = vsub.f32 %v1051, %v541
        %v1084 = vsub.f32 %v1052, %v542
        %v1085 = vsub.f32 %v1053, %v543
        %v1086 = vsub.f32 %v1054, %v540
        %v1087 = vsub.f32 %v1055, %v541
        %v1088 = vsub.f32 %v1056, %v542
        %v1089 = vsub.f32 %v1057, %v543
        %v1090 = vsub.f32 %v1058, %v540
        %v1091 = vsub.f32 %v1059, %v541
        %v1092 = vsub.f32 %v1060, %v542
        %v1093 = vsub.f32 %v1061, %v543
        %v1094 = vsub.f32 %v1062, %v540
        %v1095 = vsub.f32 %v1063, %v541
        %v1096 = vsub.f32 %v1064, %v542
        %v1097 = vsub.f32 %v1065, %v543
        %v1098 = vsub.f32 %v1066, %v540
        %v1099 = vsub.f32 %v1067, %v541
        %v1100 = vsub.f32 %v1068, %v542
        %v1101 = vsub.f32 %v1069, %v543
        %v1102 = vmul.f32 %v1070, 1.442695
        %v1103 = vpow.pop %v1102
        %v1104 = vmul.f32 %v1071, 1.442695
        %v1105 = vpow.pop %v1104
        %v1106 = vmul.f32 %v1072, 1.442695
        %v1107 = vpow.pop %v1106
        %v1108 = vmul.f32 %v1073, 1.442695
        %v1109 = vpow.pop %v1108
        %v1110 = vmul.f32 %v1074, 1.442695
        %v1111 = vpow.pop %v1110
        %v1112 = vmul.f32 %v1075, 1.442695
        %v1113 = vpow.pop %v1112
        %v1114 = vmul.f32 %v1076, 1.442695
        %v1115 = vpow.pop %v1114
        %v1116 = vmul.f32 %v1077, 1.442695
        %v1117 = vpow.pop %v1116
        %v1118 = vmul.f32 %v1078, 1.442695
        %v1119 = vpow.pop %v1118
        %v1120 = vmul.f32 %v1079, 1.442695
        %v1121 = vpow.pop %v1120
        %v1122 = vmul.f32 %v1080, 1.442695
        %v1123 = vpow.pop %v1122
        %v1124 = vmul.f32 %v1081, 1.442695
        %v1125 = vpow.pop %v1124
        %v1126 = vmul.f32 %v1082, 1.442695
        %v1127 = vpow.pop %v1126
        %v1128 = vmul.f32 %v1083, 1.442695
        %v1129 = vpow.pop %v1128
        %v1130 = vmul.f32 %v1084, 1.442695
        %v1131 = vpow.pop %v1130
        %v1132 = vmul.f32 %v1085, 1.442695
        %v1133 = vpow.pop %v1132
        %v1134 = vmul.f32 %v1086, 1.442695
        %v1135 = vpow.pop %v1134
        %v1136 = vmul.f32 %v1087, 1.442695
        %v1137 = vpow.pop %v1136
        %v1138 = vmul.f32 %v1088, 1.442695
        %v1139 = vpow.pop %v1138
        %v1140 = vmul.f32 %v1089, 1.442695
        %v1141 = vpow.pop %v1140
        %v1142 = vmul.f32 %v1090, 1.442695
        %v1143 = vpow.pop %v1142
        %v1144 = vmul.f32 %v1091, 1.442695
        %v1145 = vpow.pop %v1144
        %v1146 = vmul.f32 %v1092, 1.442695
        %v1147 = vpow.pop %v1146
        %v1148 = vmul.f32 %v1093, 1.442695
        %v1149 = vpow.pop %v1148
        %v1150 = vmul.f32 %v1094, 1.442695
        %v1151 = vpow.pop %v1150
        %v1152 = vmul.f32 %v1095, 1.442695
        %v1153 = vpow.pop %v1152
        %v1154 = vmul.f32 %v1096, 1.442695
        %v1155 = vpow.pop %v1154
        %v1156 = vmul.f32 %v1097, 1.442695
        %v1157 = vpow.pop %v1156
        %v1158 = vmul.f32 %v1098, 1.442695
        %v1159 = vpow.pop %v1158
        %v1160 = vmul.f32 %v1099, 1.442695
        %v1161 = vpow.pop %v1160
        %v1162 = vmul.f32 %v1100, 1.442695
        %v1163 = vpow.pop %v1162
        %v1164 = vmul.f32 %v1101, 1.442695
        %v1165 = vpow.pop %v1164
        %v1167 = vcombine.high %v461, %v461
        %v1169 = vunpack.c.l.s4 1966171168
        %v1170 = vunpack.c.0.s8 %v1169
        %v1171 = vlaneseq
        %v1172 = vshrl.u32 %v1171, 7
        %v1173 = vsub.s32 %v1170, %v1172
        %v1174 = vrot.slane %v461, %v1173
        %v1176 = vunpack.c.l.s4 1966171168
        %v1177 = vunpack.c.0.s8 %v1176
        %v1178 = vlaneseq
        %v1179 = vshrl.u32 %v1178, 7
        %v1180 = vsub.s32 %v1177, %v1179
        %v1181 = vrot.slane %v1167, %v1180
        %v1182 = vcombine.high %v1174, %v1174
        %v1183 = vcombine.high %v1181, %v1181
        %v1185 = vunpack.c.l.s4 1966171168
        %v1186 = vunpack.c.0.s8 %v1185
        %v1187 = vlaneseq
        %v1188 = vshrl.u32 %v1187, 7
        %v1189 = vsub.s32 %v1186, %v1188
        %v1190 = vrot.slane %v1174, %v1189
        %v1192 = vunpack.c.l.s4 1966171168
        %v1193 = vunpack.c.0.s8 %v1192
        %v1194 = vlaneseq
        %v1195 = vshrl.u32 %v1194, 7
        %v1196 = vsub.s32 %v1193, %v1195
        %v1197 = vrot.slane %v1181, %v1196
        %v1199 = vunpack.c.l.s4 1966171168
        %v1200 = vunpack.c.0.s8 %v1199
        %v1201 = vlaneseq
        %v1202 = vshrl.u32 %v1201, 7
        %v1203 = vsub.s32 %v1200, %v1202
        %v1204 = vrot.slane %v1182, %v1203
        %v1206 = vunpack.c.l.s4 1966171168
        %v1207 = vunpack.c.0.s8 %v1206
        %v1208 = vlaneseq
        %v1209 = vshrl.u32 %v1208, 7
        %v1210 = vsub.s32 %v1207, %v1209
        %v1211 = vrot.slane %v1183, %v1210
        %v1212 = vcombine.high %v1190, %v1190
        %v1213 = vcombine.high %v1197, %v1197
        %v1214 = vcombine.high %v1204, %v1204
        %v1215 = vcombine.high %v1211, %v1211
        %v1216 = vlaneseq
        %v1217 = vshrl.u32 %v1216, 7
        %v1218 = vsub.s32 0, %v1217
        %v1219 = vrot.slane %v1190, %v1218
        %v1220 = vlaneseq
        %v1221 = vshrl.u32 %v1220, 7
        %v1222 = vsub.s32 0, %v1221
        %v1223 = vrot.slane %v1204, %v1222
        %v1224 = vlaneseq
        %v1225 = vshrl.u32 %v1224, 7
        %v1226 = vsub.s32 0, %v1225
        %v1227 = vrot.slane %v1212, %v1226
        %v1228 = vlaneseq
        %v1229 = vshrl.u32 %v1228, 7
        %v1230 = vsub.s32 0, %v1229
        %v1231 = vrot.slane %v1214, %v1230
        %v1232 = vlaneseq
        %v1233 = vshrl.u32 %v1232, 7
        %v1234 = vsub.s32 0, %v1233
        %v1235 = vrot.slane %v1197, %v1234
        %v1236 = vlaneseq
        %v1237 = vshrl.u32 %v1236, 7
        %v1238 = vsub.s32 0, %v1237
        %v1239 = vrot.slane %v1211, %v1238
        %v1240 = vlaneseq
        %v1241 = vshrl.u32 %v1240, 7
        %v1242 = vsub.s32 0, %v1241
        %v1243 = vrot.slane %v1213, %v1242
        %v1244 = vlaneseq
        %v1245 = vshrl.u32 %v1244, 7
        %v1246 = vsub.s32 0, %v1245
        %v1247 = vrot.slane %v1215, %v1246
        %v1256 = vmul.f32 %v1103, %v1219
        %v1257 = vmul.f32 %v1105, %v1219
        %v1258 = vmul.f32 %v1107, %v1219
        %v1259 = vmul.f32 %v1109, %v1219
        %v1260 = vmul.f32 %v1111, %v1223
        %v1261 = vmul.f32 %v1113, %v1223
        %v1262 = vmul.f32 %v1115, %v1223
        %v1263 = vmul.f32 %v1117, %v1223
        %v1264 = vmul.f32 %v1119, %v1227
        %v1265 = vmul.f32 %v1121, %v1227
        %v1266 = vmul.f32 %v1123, %v1227
        %v1267 = vmul.f32 %v1125, %v1227
        %v1268 = vmul.f32 %v1127, %v1231
        %v1269 = vmul.f32 %v1129, %v1231
        %v1270 = vmul.f32 %v1131, %v1231
        %v1271 = vmul.f32 %v1133, %v1231
        %v1272 = vmul.f32 %v1135, %v1235
        %v1273 = vmul.f32 %v1137, %v1235
        %v1274 = vmul.f32 %v1139, %v1235
        %v1275 = vmul.f32 %v1141, %v1235
        %v1276 = vmul.f32 %v1143, %v1239
        %v1277 = vmul.f32 %v1145, %v1239
        %v1278 = vmul.f32 %v1147, %v1239
        %v1279 = vmul.f32 %v1149, %v1239
        %v1280 = vmul.f32 %v1151, %v1243
        %v1281 = vmul.f32 %v1153, %v1243
        %v1282 = vmul.f32 %v1155, %v1243
        %v1283 = vmul.f32 %v1157, %v1243
        %v1284 = vmul.f32 %v1159, %v1247
        %v1285 = vmul.f32 %v1161, %v1247
        %v1286 = vmul.f32 %v1163, %v1247
        %v1287 = vmul.f32 %v1165, %v1247
        %v1288 = vadd.f32 %v1256, %v1260
        %v1289 = vadd.f32 %v1288, %v1264
        %v1290 = vadd.f32 %v1289, %v1268
        %v1291 = vadd.f32 %v1290, %v1272
        %v1292 = vadd.f32 %v1291, %v1276
        %v1293 = vadd.f32 %v1292, %v1280
        %v1294 = vadd.f32 %v1293, %v1284
        %v1295 = vadd.f32 %v1257, %v1261
        %v1296 = vadd.f32 %v1295, %v1265
        %v1297 = vadd.f32 %v1296, %v1269
        %v1298 = vadd.f32 %v1297, %v1273
        %v1299 = vadd.f32 %v1298, %v1277
        %v1300 = vadd.f32 %v1299, %v1281
        %v1301 = vadd.f32 %v1300, %v1285
        %v1302 = vadd.f32 %v1258, %v1262
        %v1303 = vadd.f32 %v1302, %v1266
        %v1304 = vadd.f32 %v1303, %v1270
        %v1305 = vadd.f32 %v1304, %v1274
        %v1306 = vadd.f32 %v1305, %v1278
        %v1307 = vadd.f32 %v1306, %v1282
        %v1308 = vadd.f32 %v1307, %v1286
        %v1309 = vadd.f32 %v1259, %v1263
        %v1310 = vadd.f32 %v1309, %v1267
        %v1311 = vadd.f32 %v1310, %v1271
        %v1312 = vadd.f32 %v1311, %v1275
        %v1313 = vadd.f32 %v1312, %v1279
        %v1314 = vadd.f32 %v1313, %v1283
        %v1315 = vadd.f32 %v1314, %v1287
        %v1316 = vadd.f32 %v912, %v1294
        %v1317 = vadd.f32 %v913, %v1301
        %v1318 = vadd.f32 %v914, %v1308
        %v1319 = vadd.f32 %v915, %v1315
        %v1320 = vadd.f32 %v1103, %v1111
        %v1321 = vadd.f32 %v1320, %v1119
        %v1322 = vadd.f32 %v1321, %v1127
        %v1323 = vadd.f32 %v1322, %v1135
        %v1324 = vadd.f32 %v1323, %v1143
        %v1325 = vadd.f32 %v1324, %v1151
        %v1326 = vadd.f32 %v1325, %v1159
        %v1327 = vadd.f32 %v1105, %v1113
        %v1328 = vadd.f32 %v1327, %v1121
        %v1329 = vadd.f32 %v1328, %v1129
        %v1330 = vadd.f32 %v1329, %v1137
        %v1331 = vadd.f32 %v1330, %v1145
        %v1332 = vadd.f32 %v1331, %v1153
        %v1333 = vadd.f32 %v1332, %v1161
        %v1334 = vadd.f32 %v1107, %v1115
        %v1335 = vadd.f32 %v1334, %v1123
        %v1336 = vadd.f32 %v1335, %v1131
        %v1337 = vadd.f32 %v1336, %v1139
        %v1338 = vadd.f32 %v1337, %v1147
        %v1339 = vadd.f32 %v1338, %v1155
        %v1340 = vadd.f32 %v1339, %v1163
        %v1341 = vadd.f32 %v1109, %v1117
        %v1342 = vadd.f32 %v1341, %v1125
        %v1343 = vadd.f32 %v1342, %v1133
        %v1344 = vadd.f32 %v1343, %v1141
        %v1345 = vadd.f32 %v1344, %v1149
        %v1346 = vadd.f32 %v1345, %v1157
        %v1347 = vadd.f32 %v1346, %v1165
        %v1348 = vadd.f32 %v944, %v1326
        %v1349 = vadd.f32 %v945, %v1333
        %v1350 = vadd.f32 %v946, %v1340
        %v1351 = vadd.f32 %v947, %v1347
        %v1353 = vcombine.high %v486, %v486
        %v1355 = vunpack.c.l.s4 1966171168
        %v1356 = vunpack.c.0.s8 %v1355
        %v1357 = vlaneseq
        %v1358 = vshrl.u32 %v1357, 7
        %v1359 = vsub.s32 %v1356, %v1358
        %v1360 = vrot.slane %v486, %v1359
        %v1362 = vunpack.c.l.s4 1966171168
        %v1363 = vunpack.c.0.s8 %v1362
        %v1364 = vlaneseq
        %v1365 = vshrl.u32 %v1364, 7
        %v1366 = vsub.s32 %v1363, %v1365
        %v1367 = vrot.slane %v1353, %v1366
        %v1368 = vcombine.high %v1360, %v1360
        %v1369 = vcombine.high %v1367, %v1367
        %v1371 = vunpack.c.l.s4 1966171168
        %v1372 = vunpack.c.0.s8 %v1371
        %v1373 = vlaneseq
        %v1374 = vshrl.u32 %v1373, 7
        %v1375 = vsub.s32 %v1372, %v1374
        %v1376 = vrot.slane %v1360, %v1375
        %v1378 = vunpack.c.l.s4 1966171168
        %v1379 = vunpack.c.0.s8 %v1378
        %v1380 = vlaneseq
        %v1381 = vshrl.u32 %v1380, 7
        %v1382 = vsub.s32 %v1379, %v1381
        %v1383 = vrot.slane %v1367, %v1382
        %v1385 = vunpack.c.l.s4 1966171168
        %v1386 = vunpack.c.0.s8 %v1385
        %v1387 = vlaneseq
        %v1388 = vshrl.u32 %v1387, 7
        %v1389 = vsub.s32 %v1386, %v1388
        %v1390 = vrot.slane %v1368, %v1389
        %v1392 = vunpack.c.l.s4 1966171168
        %v1393 = vunpack.c.0.s8 %v1392
        %v1394 = vlaneseq
        %v1395 = vshrl.u32 %v1394, 7
        %v1396 = vsub.s32 %v1393, %v1395
        %v1397 = vrot.slane %v1369, %v1396
        %v1398 = vcombine.high %v1376, %v1376
        %v1399 = vcombine.high %v1383, %v1383
        %v1400 = vcombine.high %v1390, %v1390
        %v1401 = vcombine.high %v1397, %v1397
        %v1402 = vlaneseq
        %v1403 = vshrl.u32 %v1402, 7
        %v1404 = vsub.s32 0, %v1403
        %v1405 = vrot.slane %v1376, %v1404
        %v1406 = vlaneseq
        %v1407 = vshrl.u32 %v1406, 7
        %v1408 = vsub.s32 0, %v1407
        %v1409 = vrot.slane %v1390, %v1408
        %v1410 = vlaneseq
        %v1411 = vshrl.u32 %v1410, 7
        %v1412 = vsub.s32 0, %v1411
        %v1413 = vrot.slane %v1398, %v1412
        %v1414 = vlaneseq
        %v1415 = vshrl.u32 %v1414, 7
        %v1416 = vsub.s32 0, %v1415
        %v1417 = vrot.slane %v1400, %v1416
        %v1418 = vlaneseq
        %v1419 = vshrl.u32 %v1418, 7
        %v1420 = vsub.s32 0, %v1419
        %v1421 = vrot.slane %v1383, %v1420
        %v1422 = vlaneseq
        %v1423 = vshrl.u32 %v1422, 7
        %v1424 = vsub.s32 0, %v1423
        %v1425 = vrot.slane %v1397, %v1424
        %v1426 = vlaneseq
        %v1427 = vshrl.u32 %v1426, 7
        %v1428 = vsub.s32 0, %v1427
        %v1429 = vrot.slane %v1399, %v1428
        %v1430 = vlaneseq
        %v1431 = vshrl.u32 %v1430, 7
        %v1432 = vsub.s32 0, %v1431
        %v1433 = vrot.slane %v1401, %v1432
        %v1442 = vmul.f32 %v1405, %v496
        %v1443 = vmul.f32 %v1405, %v501
        %v1444 = vmul.f32 %v1405, %v506
        %v1445 = vmul.f32 %v1405, %v511
        %v1446 = vmul.f32 %v1409, %v496
        %v1447 = vmul.f32 %v1409, %v501
        %v1448 = vmul.f32 %v1409, %v506
        %v1449 = vmul.f32 %v1409, %v511
        %v1450 = vmul.f32 %v1413, %v496
        %v1451 = vmul.f32 %v1413, %v501
        %v1452 = vmul.f32 %v1413, %v506
        %v1453 = vmul.f32 %v1413, %v511
        %v1454 = vmul.f32 %v1417, %v496
        %v1455 = vmul.f32 %v1417, %v501
        %v1456 = vmul.f32 %v1417, %v506
        %v1457 = vmul.f32 %v1417, %v511
        %v1458 = vmul.f32 %v1421, %v496
        %v1459 = vmul.f32 %v1421, %v501
        %v1460 = vmul.f32 %v1421, %v506
        %v1461 = vmul.f32 %v1421, %v511
        %v1462 = vmul.f32 %v1425, %v496
        %v1463 = vmul.f32 %v1425, %v501
        %v1464 = vmul.f32 %v1425, %v506
        %v1465 = vmul.f32 %v1425, %v511
        %v1466 = vmul.f32 %v1429, %v496
        %v1467 = vmul.f32 %v1429, %v501
        %v1468 = vmul.f32 %v1429, %v506
        %v1469 = vmul.f32 %v1429, %v511
        %v1470 = vmul.f32 %v1433, %v496
        %v1471 = vmul.f32 %v1433, %v501
        %v1472 = vmul.f32 %v1433, %v506
        %v1473 = vmul.f32 %v1433, %v511
        %v1474 = vsub.f32 %v1442, %v540
        %v1475 = vsub.f32 %v1443, %v541
        %v1476 = vsub.f32 %v1444, %v542
        %v1477 = vsub.f32 %v1445, %v543
        %v1478 = vsub.f32 %v1446, %v540
        %v1479 = vsub.f32 %v1447, %v541
        %v1480 = vsub.f32 %v1448, %v542
        %v1481 = vsub.f32 %v1449, %v543
        %v1482 = vsub.f32 %v1450, %v540
        %v1483 = vsub.f32 %v1451, %v541
        %v1484 = vsub.f32 %v1452, %v542
        %v1485 = vsub.f32 %v1453, %v543
        %v1486 = vsub.f32 %v1454, %v540
        %v1487 = vsub.f32 %v1455, %v541
        %v1488 = vsub.f32 %v1456, %v542
        %v1489 = vsub.f32 %v1457, %v543
        %v1490 = vsub.f32 %v1458, %v540
        %v1491 = vsub.f32 %v1459, %v541
        %v1492 = vsub.f32 %v1460, %v542
        %v1493 = vsub.f32 %v1461, %v543
        %v1494 = vsub.f32 %v1462, %v540
        %v1495 = vsub.f32 %v1463, %v541
        %v1496 = vsub.f32 %v1464, %v542
        %v1497 = vsub.f32 %v1465, %v543
        %v1498 = vsub.f32 %v1466, %v540
        %v1499 = vsub.f32 %v1467, %v541
        %v1500 = vsub.f32 %v1468, %v542
        %v1501 = vsub.f32 %v1469, %v543
        %v1502 = vsub.f32 %v1470, %v540
        %v1503 = vsub.f32 %v1471, %v541
        %v1504 = vsub.f32 %v1472, %v542
        %v1505 = vsub.f32 %v1473, %v543
        %v1506 = vmul.f32 %v1474, 1.442695
        %v1507 = vpow.pop %v1506
        %v1508 = vmul.f32 %v1475, 1.442695
        %v1509 = vpow.pop %v1508
        %v1510 = vmul.f32 %v1476, 1.442695
        %v1511 = vpow.pop %v1510
        %v1512 = vmul.f32 %v1477, 1.442695
        %v1513 = vpow.pop %v1512
        %v1514 = vmul.f32 %v1478, 1.442695
        %v1515 = vpow.pop %v1514
        %v1516 = vmul.f32 %v1479, 1.442695
        %v1517 = vpow.pop %v1516
        %v1518 = vmul.f32 %v1480, 1.442695
        %v1519 = vpow.pop %v1518
        %v1520 = vmul.f32 %v1481, 1.442695
        %v1521 = vpow.pop %v1520
        %v1522 = vmul.f32 %v1482, 1.442695
        %v1523 = vpow.pop %v1522
        %v1524 = vmul.f32 %v1483, 1.442695
        %v1525 = vpow.pop %v1524
        %v1526 = vmul.f32 %v1484, 1.442695
        %v1527 = vpow.pop %v1526
        %v1528 = vmul.f32 %v1485, 1.442695
        %v1529 = vpow.pop %v1528
        %v1530 = vmul.f32 %v1486, 1.442695
        %v1531 = vpow.pop %v1530
        %v1532 = vmul.f32 %v1487, 1.442695
        %v1533 = vpow.pop %v1532
        %v1534 = vmul.f32 %v1488, 1.442695
        %v1535 = vpow.pop %v1534
        %v1536 = vmul.f32 %v1489, 1.442695
        %v1537 = vpow.pop %v1536
        %v1538 = vmul.f32 %v1490, 1.442695
        %v1539 = vpow.pop %v1538
        %v1540 = vmul.f32 %v1491, 1.442695
        %v1541 = vpow.pop %v1540
        %v1542 = vmul.f32 %v1492, 1.442695
        %v1543 = vpow.pop %v1542
        %v1544 = vmul.f32 %v1493, 1.442695
        %v1545 = vpow.pop %v1544
        %v1546 = vmul.f32 %v1494, 1.442695
        %v1547 = vpow.pop %v1546
        %v1548 = vmul.f32 %v1495, 1.442695
        %v1549 = vpow.pop %v1548
        %v1550 = vmul.f32 %v1496, 1.442695
        %v1551 = vpow.pop %v1550
        %v1552 = vmul.f32 %v1497, 1.442695
        %v1553 = vpow.pop %v1552
        %v1554 = vmul.f32 %v1498, 1.442695
        %v1555 = vpow.pop %v1554
        %v1556 = vmul.f32 %v1499, 1.442695
        %v1557 = vpow.pop %v1556
        %v1558 = vmul.f32 %v1500, 1.442695
        %v1559 = vpow.pop %v1558
        %v1560 = vmul.f32 %v1501, 1.442695
        %v1561 = vpow.pop %v1560
        %v1562 = vmul.f32 %v1502, 1.442695
        %v1563 = vpow.pop %v1562
        %v1564 = vmul.f32 %v1503, 1.442695
        %v1565 = vpow.pop %v1564
        %v1566 = vmul.f32 %v1504, 1.442695
        %v1567 = vpow.pop %v1566
        %v1568 = vmul.f32 %v1505, 1.442695
        %v1569 = vpow.pop %v1568
        %v1571 = vcombine.high %v466, %v466
        %v1573 = vunpack.c.l.s4 1966171168
        %v1574 = vunpack.c.0.s8 %v1573
        %v1575 = vlaneseq
        %v1576 = vshrl.u32 %v1575, 7
        %v1577 = vsub.s32 %v1574, %v1576
        %v1578 = vrot.slane %v466, %v1577
        %v1580 = vunpack.c.l.s4 1966171168
        %v1581 = vunpack.c.0.s8 %v1580
        %v1582 = vlaneseq
        %v1583 = vshrl.u32 %v1582, 7
        %v1584 = vsub.s32 %v1581, %v1583
        %v1585 = vrot.slane %v1571, %v1584
        %v1586 = vcombine.high %v1578, %v1578
        %v1587 = vcombine.high %v1585, %v1585
        %v1589 = vunpack.c.l.s4 1966171168
        %v1590 = vunpack.c.0.s8 %v1589
        %v1591 = vlaneseq
        %v1592 = vshrl.u32 %v1591, 7
        %v1593 = vsub.s32 %v1590, %v1592
        %v1594 = vrot.slane %v1578, %v1593
        %v1596 = vunpack.c.l.s4 1966171168
        %v1597 = vunpack.c.0.s8 %v1596
        %v1598 = vlaneseq
        %v1599 = vshrl.u32 %v1598, 7
        %v1600 = vsub.s32 %v1597, %v1599
        %v1601 = vrot.slane %v1585, %v1600
        %v1603 = vunpack.c.l.s4 1966171168
        %v1604 = vunpack.c.0.s8 %v1603
        %v1605 = vlaneseq
        %v1606 = vshrl.u32 %v1605, 7
        %v1607 = vsub.s32 %v1604, %v1606
        %v1608 = vrot.slane %v1586, %v1607
        %v1610 = vunpack.c.l.s4 1966171168
        %v1611 = vunpack.c.0.s8 %v1610
        %v1612 = vlaneseq
        %v1613 = vshrl.u32 %v1612, 7
        %v1614 = vsub.s32 %v1611, %v1613
        %v1615 = vrot.slane %v1587, %v1614
        %v1616 = vcombine.high %v1594, %v1594
        %v1617 = vcombine.high %v1601, %v1601
        %v1618 = vcombine.high %v1608, %v1608
        %v1619 = vcombine.high %v1615, %v1615
        %v1620 = vlaneseq
        %v1621 = vshrl.u32 %v1620, 7
        %v1622 = vsub.s32 0, %v1621
        %v1623 = vrot.slane %v1594, %v1622
        %v1624 = vlaneseq
        %v1625 = vshrl.u32 %v1624, 7
        %v1626 = vsub.s32 0, %v1625
        %v1627 = vrot.slane %v1608, %v1626
        %v1628 = vlaneseq
        %v1629 = vshrl.u32 %v1628, 7
        %v1630 = vsub.s32 0, %v1629
        %v1631 = vrot.slane %v1616, %v1630
        %v1632 = vlaneseq
        %v1633 = vshrl.u32 %v1632, 7
        %v1634 = vsub.s32 0, %v1633
        %v1635 = vrot.slane %v1618, %v1634
        %v1636 = vlaneseq
        %v1637 = vshrl.u32 %v1636, 7
        %v1638 = vsub.s32 0, %v1637
        %v1639 = vrot.slane %v1601, %v1638
        %v1640 = vlaneseq
        %v1641 = vshrl.u32 %v1640, 7
        %v1642 = vsub.s32 0, %v1641
        %v1643 = vrot.slane %v1615, %v1642
        %v1644 = vlaneseq
        %v1645 = vshrl.u32 %v1644, 7
        %v1646 = vsub.s32 0, %v1645
        %v1647 = vrot.slane %v1617, %v1646
        %v1648 = vlaneseq
        %v1649 = vshrl.u32 %v1648, 7
        %v1650 = vsub.s32 0, %v1649
        %v1651 = vrot.slane %v1619, %v1650
        %v1660 = vmul.f32 %v1507, %v1623
        %v1661 = vmul.f32 %v1509, %v1623
        %v1662 = vmul.f32 %v1511, %v1623
        %v1663 = vmul.f32 %v1513, %v1623
        %v1664 = vmul.f32 %v1515, %v1627
        %v1665 = vmul.f32 %v1517, %v1627
        %v1666 = vmul.f32 %v1519, %v1627
        %v1667 = vmul.f32 %v1521, %v1627
        %v1668 = vmul.f32 %v1523, %v1631
        %v1669 = vmul.f32 %v1525, %v1631
        %v1670 = vmul.f32 %v1527, %v1631
        %v1671 = vmul.f32 %v1529, %v1631
        %v1672 = vmul.f32 %v1531, %v1635
        %v1673 = vmul.f32 %v1533, %v1635
        %v1674 = vmul.f32 %v1535, %v1635
        %v1675 = vmul.f32 %v1537, %v1635
        %v1676 = vmul.f32 %v1539, %v1639
        %v1677 = vmul.f32 %v1541, %v1639
        %v1678 = vmul.f32 %v1543, %v1639
        %v1679 = vmul.f32 %v1545, %v1639
        %v1680 = vmul.f32 %v1547, %v1643
        %v1681 = vmul.f32 %v1549, %v1643
        %v1682 = vmul.f32 %v1551, %v1643
        %v1683 = vmul.f32 %v1553, %v1643
        %v1684 = vmul.f32 %v1555, %v1647
        %v1685 = vmul.f32 %v1557, %v1647
        %v1686 = vmul.f32 %v1559, %v1647
        %v1687 = vmul.f32 %v1561, %v1647
        %v1688 = vmul.f32 %v1563, %v1651
        %v1689 = vmul.f32 %v1565, %v1651
        %v1690 = vmul.f32 %v1567, %v1651
        %v1691 = vmul.f32 %v1569, %v1651
        %v1692 = vadd.f32 %v1660, %v1664
        %v1693 = vadd.f32 %v1692, %v1668
        %v1694 = vadd.f32 %v1693, %v1672
        %v1695 = vadd.f32 %v1694, %v1676
        %v1696 = vadd.f32 %v1695, %v1680
        %v1697 = vadd.f32 %v1696, %v1684
        %v1698 = vadd.f32 %v1697, %v1688
        %v1699 = vadd.f32 %v1661, %v1665
        %v1700 = vadd.f32 %v1699, %v1669
        %v1701 = vadd.f32 %v1700, %v1673
        %v1702 = vadd.f32 %v1701, %v1677
        %v1703 = vadd.f32 %v1702, %v1681
        %v1704 = vadd.f32 %v1703, %v1685
        %v1705 = vadd.f32 %v1704, %v1689
        %v1706 = vadd.f32 %v1662, %v1666
        %v1707 = vadd.f32 %v1706, %v1670
        %v1708 = vadd.f32 %v1707, %v1674
        %v1709 = vadd.f32 %v1708, %v1678
        %v1710 = vadd.f32 %v1709, %v1682
        %v1711 = vadd.f32 %v1710, %v1686
        %v1712 = vadd.f32 %v1711, %v1690
        %v1713 = vadd.f32 %v1663, %v1667
        %v1714 = vadd.f32 %v1713, %v1671
        %v1715 = vadd.f32 %v1714, %v1675
        %v1716 = vadd.f32 %v1715, %v1679
        %v1717 = vadd.f32 %v1716, %v1683
        %v1718 = vadd.f32 %v1717, %v1687
        %v1719 = vadd.f32 %v1718, %v1691
        %v1720 = vadd.f32 %v1316, %v1698
        %v1721 = vadd.f32 %v1317, %v1705
        %v1722 = vadd.f32 %v1318, %v1712
        %v1723 = vadd.f32 %v1319, %v1719
        %v1724 = vadd.f32 %v1507, %v1515
        %v1725 = vadd.f32 %v1724, %v1523
        %v1726 = vadd.f32 %v1725, %v1531
        %v1727 = vadd.f32 %v1726, %v1539
        %v1728 = vadd.f32 %v1727, %v1547
        %v1729 = vadd.f32 %v1728, %v1555
        %v1730 = vadd.f32 %v1729, %v1563
        %v1731 = vadd.f32 %v1509, %v1517
        %v1732 = vadd.f32 %v1731, %v1525
        %v1733 = vadd.f32 %v1732, %v1533
        %v1734 = vadd.f32 %v1733, %v1541
        %v1735 = vadd.f32 %v1734, %v1549
        %v1736 = vadd.f32 %v1735, %v1557
        %v1737 = vadd.f32 %v1736, %v1565
        %v1738 = vadd.f32 %v1511, %v1519
        %v1739 = vadd.f32 %v1738, %v1527
        %v1740 = vadd.f32 %v1739, %v1535
        %v1741 = vadd.f32 %v1740, %v1543
        %v1742 = vadd.f32 %v1741, %v1551
        %v1743 = vadd.f32 %v1742, %v1559
        %v1744 = vadd.f32 %v1743, %v1567
        %v1745 = vadd.f32 %v1513, %v1521
        %v1746 = vadd.f32 %v1745, %v1529
        %v1747 = vadd.f32 %v1746, %v1537
        %v1748 = vadd.f32 %v1747, %v1545
        %v1749 = vadd.f32 %v1748, %v1553
        %v1750 = vadd.f32 %v1749, %v1561
        %v1751 = vadd.f32 %v1750, %v1569
        %v1752 = vadd.f32 %v1348, %v1730
        %v1753 = vadd.f32 %v1349, %v1737
        %v1754 = vadd.f32 %v1350, %v1744
        %v1755 = vadd.f32 %v1351, %v1751
        %v1757 = vcombine.high %v491, %v491
        %v1759 = vunpack.c.l.s4 1966171168
        %v1760 = vunpack.c.0.s8 %v1759
        %v1761 = vlaneseq
        %v1762 = vshrl.u32 %v1761, 7
        %v1763 = vsub.s32 %v1760, %v1762
        %v1764 = vrot.slane %v491, %v1763
        %v1766 = vunpack.c.l.s4 1966171168
        %v1767 = vunpack.c.0.s8 %v1766
        %v1768 = vlaneseq
        %v1769 = vshrl.u32 %v1768, 7
        %v1770 = vsub.s32 %v1767, %v1769
        %v1771 = vrot.slane %v1757, %v1770
        %v1772 = vcombine.high %v1764, %v1764
        %v1773 = vcombine.high %v1771, %v1771
        %v1775 = vunpack.c.l.s4 1966171168
        %v1776 = vunpack.c.0.s8 %v1775
        %v1777 = vlaneseq
        %v1778 = vshrl.u32 %v1777, 7
        %v1779 = vsub.s32 %v1776, %v1778
        %v1780 = vrot.slane %v1764, %v1779
        %v1782 = vunpack.c.l.s4 1966171168
        %v1783 = vunpack.c.0.s8 %v1782
        %v1784 = vlaneseq
        %v1785 = vshrl.u32 %v1784, 7
        %v1786 = vsub.s32 %v1783, %v1785
        %v1787 = vrot.slane %v1771, %v1786
        %v1789 = vunpack.c.l.s4 1966171168
        %v1790 = vunpack.c.0.s8 %v1789
        %v1791 = vlaneseq
        %v1792 = vshrl.u32 %v1791, 7
        %v1793 = vsub.s32 %v1790, %v1792
        %v1794 = vrot.slane %v1772, %v1793
        %v1796 = vunpack.c.l.s4 1966171168
        %v1797 = vunpack.c.0.s8 %v1796
        %v1798 = vlaneseq
        %v1799 = vshrl.u32 %v1798, 7
        %v1800 = vsub.s32 %v1797, %v1799
        %v1801 = vrot.slane %v1773, %v1800
        %v1802 = vcombine.high %v1780, %v1780
        %v1803 = vcombine.high %v1787, %v1787
        %v1804 = vcombine.high %v1794, %v1794
        %v1805 = vcombine.high %v1801, %v1801
        %v1806 = vlaneseq
        %v1807 = vshrl.u32 %v1806, 7
        %v1808 = vsub.s32 0, %v1807
        %v1809 = vrot.slane %v1780, %v1808
        %v1810 = vlaneseq
        %v1811 = vshrl.u32 %v1810, 7
        %v1812 = vsub.s32 0, %v1811
        %v1813 = vrot.slane %v1794, %v1812
        %v1814 = vlaneseq
        %v1815 = vshrl.u32 %v1814, 7
        %v1816 = vsub.s32 0, %v1815
        %v1817 = vrot.slane %v1802, %v1816
        %v1818 = vlaneseq
        %v1819 = vshrl.u32 %v1818, 7
        %v1820 = vsub.s32 0, %v1819
        %v1821 = vrot.slane %v1804, %v1820
        %v1822 = vlaneseq
        %v1823 = vshrl.u32 %v1822, 7
        %v1824 = vsub.s32 0, %v1823
        %v1825 = vrot.slane %v1787, %v1824
        %v1826 = vlaneseq
        %v1827 = vshrl.u32 %v1826, 7
        %v1828 = vsub.s32 0, %v1827
        %v1829 = vrot.slane %v1801, %v1828
        %v1830 = vlaneseq
        %v1831 = vshrl.u32 %v1830, 7
        %v1832 = vsub.s32 0, %v1831
        %v1833 = vrot.slane %v1803, %v1832
        %v1834 = vlaneseq
        %v1835 = vshrl.u32 %v1834, 7
        %v1836 = vsub.s32 0, %v1835
        %v1837 = vrot.slane %v1805, %v1836
        %v1846 = vmul.f32 %v1809, %v496
        %v1847 = vmul.f32 %v1809, %v501
        %v1848 = vmul.f32 %v1809, %v506
        %v1849 = vmul.f32 %v1809, %v511
        %v1850 = vmul.f32 %v1813, %v496
        %v1851 = vmul.f32 %v1813, %v501
        %v1852 = vmul.f32 %v1813, %v506
        %v1853 = vmul.f32 %v1813, %v511
        %v1854 = vmul.f32 %v1817, %v496
        %v1855 = vmul.f32 %v1817, %v501
        %v1856 = vmul.f32 %v1817, %v506
        %v1857 = vmul.f32 %v1817, %v511
        %v1858 = vmul.f32 %v1821, %v496
        %v1859 = vmul.f32 %v1821, %v501
        %v1860 = vmul.f32 %v1821, %v506
        %v1861 = vmul.f32 %v1821, %v511
        %v1862 = vmul.f32 %v1825, %v496
        %v1863 = vmul.f32 %v1825, %v501
        %v1864 = vmul.f32 %v1825, %v506
        %v1865 = vmul.f32 %v1825, %v511
        %v1866 = vmul.f32 %v1829, %v496
        %v1867 = vmul.f32 %v1829, %v501
        %v1868 = vmul.f32 %v1829, %v506
        %v1869 = vmul.f32 %v1829, %v511
        %v1870 = vmul.f32 %v1833, %v496
        %v1871 = vmul.f32 %v1833, %v501
        %v1872 = vmul.f32 %v1833, %v506
        %v1873 = vmul.f32 %v1833, %v511
        %v1874 = vmul.f32 %v1837, %v496
        %v1875 = vmul.f32 %v1837, %v501
        %v1876 = vmul.f32 %v1837, %v506
        %v1877 = vmul.f32 %v1837, %v511
        %v1878 = vsub.f32 %v1846, %v540
        %v1879 = vsub.f32 %v1847, %v541
        %v1880 = vsub.f32 %v1848, %v542
        %v1881 = vsub.f32 %v1849, %v543
        %v1882 = vsub.f32 %v1850, %v540
        %v1883 = vsub.f32 %v1851, %v541
        %v1884 = vsub.f32 %v1852, %v542
        %v1885 = vsub.f32 %v1853, %v543
        %v1886 = vsub.f32 %v1854, %v540
        %v1887 = vsub.f32 %v1855, %v541
        %v1888 = vsub.f32 %v1856, %v542
        %v1889 = vsub.f32 %v1857, %v543
        %v1890 = vsub.f32 %v1858, %v540
        %v1891 = vsub.f32 %v1859, %v541
        %v1892 = vsub.f32 %v1860, %v542
        %v1893 = vsub.f32 %v1861, %v543
        %v1894 = vsub.f32 %v1862, %v540
        %v1895 = vsub.f32 %v1863, %v541
        %v1896 = vsub.f32 %v1864, %v542
        %v1897 = vsub.f32 %v1865, %v543
        %v1898 = vsub.f32 %v1866, %v540
        %v1899 = vsub.f32 %v1867, %v541
        %v1900 = vsub.f32 %v1868, %v542
        %v1901 = vsub.f32 %v1869, %v543
        %v1902 = vsub.f32 %v1870, %v540
        %v1903 = vsub.f32 %v1871, %v541
        %v1904 = vsub.f32 %v1872, %v542
        %v1905 = vsub.f32 %v1873, %v543
        %v1906 = vsub.f32 %v1874, %v540
        %v1907 = vsub.f32 %v1875, %v541
        %v1908 = vsub.f32 %v1876, %v542
        %v1909 = vsub.f32 %v1877, %v543
        %v1910 = vmul.f32 %v1878, 1.442695
        %v1911 = vpow.pop %v1910
        %v1912 = vmul.f32 %v1879, 1.442695
        %v1913 = vpow.pop %v1912
        %v1914 = vmul.f32 %v1880, 1.442695
        %v1915 = vpow.pop %v1914
        %v1916 = vmul.f32 %v1881, 1.442695
        %v1917 = vpow.pop %v1916
        %v1918 = vmul.f32 %v1882, 1.442695
        %v1919 = vpow.pop %v1918
        %v1920 = vmul.f32 %v1883, 1.442695
        %v1921 = vpow.pop %v1920
        %v1922 = vmul.f32 %v1884, 1.442695
        %v1923 = vpow.pop %v1922
        %v1924 = vmul.f32 %v1885, 1.442695
        %v1925 = vpow.pop %v1924
        %v1926 = vmul.f32 %v1886, 1.442695
        %v1927 = vpow.pop %v1926
        %v1928 = vmul.f32 %v1887, 1.442695
        %v1929 = vpow.pop %v1928
        %v1930 = vmul.f32 %v1888, 1.442695
        %v1931 = vpow.pop %v1930
        %v1932 = vmul.f32 %v1889, 1.442695
        %v1933 = vpow.pop %v1932
        %v1934 = vmul.f32 %v1890, 1.442695
        %v1935 = vpow.pop %v1934
        %v1936 = vmul.f32 %v1891, 1.442695
        %v1937 = vpow.pop %v1936
        %v1938 = vmul.f32 %v1892, 1.442695
        %v1939 = vpow.pop %v1938
        %v1940 = vmul.f32 %v1893, 1.442695
        %v1941 = vpow.pop %v1940
        %v1942 = vmul.f32 %v1894, 1.442695
        %v1943 = vpow.pop %v1942
        %v1944 = vmul.f32 %v1895, 1.442695
        %v1945 = vpow.pop %v1944
        %v1946 = vmul.f32 %v1896, 1.442695
        %v1947 = vpow.pop %v1946
        %v1948 = vmul.f32 %v1897, 1.442695
        %v1949 = vpow.pop %v1948
        %v1950 = vmul.f32 %v1898, 1.442695
        %v1951 = vpow.pop %v1950
        %v1952 = vmul.f32 %v1899, 1.442695
        %v1953 = vpow.pop %v1952
        %v1954 = vmul.f32 %v1900, 1.442695
        %v1955 = vpow.pop %v1954
        %v1956 = vmul.f32 %v1901, 1.442695
        %v1957 = vpow.pop %v1956
        %v1958 = vmul.f32 %v1902, 1.442695
        %v1959 = vpow.pop %v1958
        %v1960 = vmul.f32 %v1903, 1.442695
        %v1961 = vpow.pop %v1960
        %v1962 = vmul.f32 %v1904, 1.442695
        %v1963 = vpow.pop %v1962
        %v1964 = vmul.f32 %v1905, 1.442695
        %v1965 = vpow.pop %v1964
        %v1966 = vmul.f32 %v1906, 1.442695
        %v1967 = vpow.pop %v1966
        %v1968 = vmul.f32 %v1907, 1.442695
        %v1969 = vpow.pop %v1968
        %v1970 = vmul.f32 %v1908, 1.442695
        %v1971 = vpow.pop %v1970
        %v1972 = vmul.f32 %v1909, 1.442695
        %v1973 = vpow.pop %v1972
        %v1975 = vcombine.high %v471, %v471
        %v1977 = vunpack.c.l.s4 1966171168
        %v1978 = vunpack.c.0.s8 %v1977
        %v1979 = vlaneseq
        %v1980 = vshrl.u32 %v1979, 7
        %v1981 = vsub.s32 %v1978, %v1980
        %v1982 = vrot.slane %v471, %v1981
        %v1984 = vunpack.c.l.s4 1966171168
        %v1985 = vunpack.c.0.s8 %v1984
        %v1986 = vlaneseq
        %v1987 = vshrl.u32 %v1986, 7
        %v1988 = vsub.s32 %v1985, %v1987
        %v1989 = vrot.slane %v1975, %v1988
        %v1990 = vcombine.high %v1982, %v1982
        %v1991 = vcombine.high %v1989, %v1989
        %v1993 = vunpack.c.l.s4 1966171168
        %v1994 = vunpack.c.0.s8 %v1993
        %v1995 = vlaneseq
        %v1996 = vshrl.u32 %v1995, 7
        %v1997 = vsub.s32 %v1994, %v1996
        %v1998 = vrot.slane %v1982, %v1997
        %v2000 = vunpack.c.l.s4 1966171168
        %v2001 = vunpack.c.0.s8 %v2000
        %v2002 = vlaneseq
        %v2003 = vshrl.u32 %v2002, 7
        %v2004 = vsub.s32 %v2001, %v2003
        %v2005 = vrot.slane %v1989, %v2004
        %v2007 = vunpack.c.l.s4 1966171168
        %v2008 = vunpack.c.0.s8 %v2007
        %v2009 = vlaneseq
        %v2010 = vshrl.u32 %v2009, 7
        %v2011 = vsub.s32 %v2008, %v2010
        %v2012 = vrot.slane %v1990, %v2011
        %v2014 = vunpack.c.l.s4 1966171168
        %v2015 = vunpack.c.0.s8 %v2014
        %v2016 = vlaneseq
        %v2017 = vshrl.u32 %v2016, 7
        %v2018 = vsub.s32 %v2015, %v2017
        %v2019 = vrot.slane %v1991, %v2018
        %v2020 = vcombine.high %v1998, %v1998
        %v2021 = vcombine.high %v2005, %v2005
        %v2022 = vcombine.high %v2012, %v2012
        %v2023 = vcombine.high %v2019, %v2019
        %v2024 = vlaneseq
        %v2025 = vshrl.u32 %v2024, 7
        %v2026 = vsub.s32 0, %v2025
        %v2027 = vrot.slane %v1998, %v2026
        %v2028 = vlaneseq
        %v2029 = vshrl.u32 %v2028, 7
        %v2030 = vsub.s32 0, %v2029
        %v2031 = vrot.slane %v2012, %v2030
        %v2032 = vlaneseq
        %v2033 = vshrl.u32 %v2032, 7
        %v2034 = vsub.s32 0, %v2033
        %v2035 = vrot.slane %v2020, %v2034
        %v2036 = vlaneseq
        %v2037 = vshrl.u32 %v2036, 7
        %v2038 = vsub.s32 0, %v2037
        %v2039 = vrot.slane %v2022, %v2038
        %v2040 = vlaneseq
        %v2041 = vshrl.u32 %v2040, 7
        %v2042 = vsub.s32 0, %v2041
        %v2043 = vrot.slane %v2005, %v2042
        %v2044 = vlaneseq
        %v2045 = vshrl.u32 %v2044, 7
        %v2046 = vsub.s32 0, %v2045
        %v2047 = vrot.slane %v2019, %v2046
        %v2048 = vlaneseq
        %v2049 = vshrl.u32 %v2048, 7
        %v2050 = vsub.s32 0, %v2049
        %v2051 = vrot.slane %v2021, %v2050
        %v2052 = vlaneseq
        %v2053 = vshrl.u32 %v2052, 7
        %v2054 = vsub.s32 0, %v2053
        %v2055 = vrot.slane %v2023, %v2054
        %v2064 = vmul.f32 %v1911, %v2027
        %v2065 = vmul.f32 %v1913, %v2027
        %v2066 = vmul.f32 %v1915, %v2027
        %v2067 = vmul.f32 %v1917, %v2027
        %v2068 = vmul.f32 %v1919, %v2031
        %v2069 = vmul.f32 %v1921, %v2031
        %v2070 = vmul.f32 %v1923, %v2031
        %v2071 = vmul.f32 %v1925, %v2031
        %v2072 = vmul.f32 %v1927, %v2035
        %v2073 = vmul.f32 %v1929, %v2035
        %v2074 = vmul.f32 %v1931, %v2035
        %v2075 = vmul.f32 %v1933, %v2035
        %v2076 = vmul.f32 %v1935, %v2039
        %v2077 = vmul.f32 %v1937, %v2039
        %v2078 = vmul.f32 %v1939, %v2039
        %v2079 = vmul.f32 %v1941, %v2039
        %v2080 = vmul.f32 %v1943, %v2043
        %v2081 = vmul.f32 %v1945, %v2043
        %v2082 = vmul.f32 %v1947, %v2043
        %v2083 = vmul.f32 %v1949, %v2043
        %v2084 = vmul.f32 %v1951, %v2047
        %v2085 = vmul.f32 %v1953, %v2047
        %v2086 = vmul.f32 %v1955, %v2047
        %v2087 = vmul.f32 %v1957, %v2047
        %v2088 = vmul.f32 %v1959, %v2051
        %v2089 = vmul.f32 %v1961, %v2051
        %v2090 = vmul.f32 %v1963, %v2051
        %v2091 = vmul.f32 %v1965, %v2051
        %v2092 = vmul.f32 %v1967, %v2055
        %v2093 = vmul.f32 %v1969, %v2055
        %v2094 = vmul.f32 %v1971, %v2055
        %v2095 = vmul.f32 %v1973, %v2055
        %v2096 = vadd.f32 %v2064, %v2068
        %v2097 = vadd.f32 %v2096, %v2072
        %v2098 = vadd.f32 %v2097, %v2076
        %v2099 = vadd.f32 %v2098, %v2080
        %v2100 = vadd.f32 %v2099, %v2084
        %v2101 = vadd.f32 %v2100, %v2088
        %v2102 = vadd.f32 %v2101, %v2092
        %v2103 = vadd.f32 %v2065, %v2069
        %v2104 = vadd.f32 %v2103, %v2073
        %v2105 = vadd.f32 %v2104, %v2077
        %v2106 = vadd.f32 %v2105, %v2081
        %v2107 = vadd.f32 %v2106, %v2085
        %v2108 = vadd.f32 %v2107, %v2089
        %v2109 = vadd.f32 %v2108, %v2093
        %v2110 = vadd.f32 %v2066, %v2070
        %v2111 = vadd.f32 %v2110, %v2074
        %v2112 = vadd.f32 %v2111, %v2078
        %v2113 = vadd.f32 %v2112, %v2082
        %v2114 = vadd.f32 %v2113, %v2086
        %v2115 = vadd.f32 %v2114, %v2090
        %v2116 = vadd.f32 %v2115, %v2094
        %v2117 = vadd.f32 %v2067, %v2071
        %v2118 = vadd.f32 %v2117, %v2075
        %v2119 = vadd.f32 %v2118, %v2079
        %v2120 = vadd.f32 %v2119, %v2083
        %v2121 = vadd.f32 %v2120, %v2087
        %v2122 = vadd.f32 %v2121, %v2091
        %v2123 = vadd.f32 %v2122, %v2095
        %v2124 = vadd.f32 %v1720, %v2102
        %v2125 = vadd.f32 %v1721, %v2109
        %v2126 = vadd.f32 %v1722, %v2116
        %v2127 = vadd.f32 %v1723, %v2123
        %v2128 = vadd.f32 %v1911, %v1919
        %v2129 = vadd.f32 %v2128, %v1927
        %v2130 = vadd.f32 %v2129, %v1935
        %v2131 = vadd.f32 %v2130, %v1943
        %v2132 = vadd.f32 %v2131, %v1951
        %v2133 = vadd.f32 %v2132, %v1959
        %v2134 = vadd.f32 %v2133, %v1967
        %v2135 = vadd.f32 %v1913, %v1921
        %v2136 = vadd.f32 %v2135, %v1929
        %v2137 = vadd.f32 %v2136, %v1937
        %v2138 = vadd.f32 %v2137, %v1945
        %v2139 = vadd.f32 %v2138, %v1953
        %v2140 = vadd.f32 %v2139, %v1961
        %v2141 = vadd.f32 %v2140, %v1969
        %v2142 = vadd.f32 %v1915, %v1923
        %v2143 = vadd.f32 %v2142, %v1931
        %v2144 = vadd.f32 %v2143, %v1939
        %v2145 = vadd.f32 %v2144, %v1947
        %v2146 = vadd.f32 %v2145, %v1955
        %v2147 = vadd.f32 %v2146, %v1963
        %v2148 = vadd.f32 %v2147, %v1971
        %v2149 = vadd.f32 %v1917, %v1925
        %v2150 = vadd.f32 %v2149, %v1933
        %v2151 = vadd.f32 %v2150, %v1941
        %v2152 = vadd.f32 %v2151, %v1949
        %v2153 = vadd.f32 %v2152, %v1957
        %v2154 = vadd.f32 %v2153, %v1965
        %v2155 = vadd.f32 %v2154, %v1973
        %v2156 = vadd.f32 %v1752, %v2134
        %v2157 = vadd.f32 %v1753, %v2141
        %v2158 = vadd.f32 %v1754, %v2148
        %v2159 = vadd.f32 %v1755, %v2155
        %v2160 = vrcp.pop %v2156
        %v2161 = vrcp.pop %v2157
        %v2162 = vrcp.pop %v2158
        %v2163 = vrcp.pop %v2159
        %v2164 = vmul.f32 %v2156, %v2160
        %v2165 = vmul.f32 %v2157, %v2161
        %v2166 = vmul.f32 %v2158, %v2162
        %v2167 = vmul.f32 %v2159, %v2163
        %v2168 = vsub.f32 2.0, %v2164
        %v2169 = vsub.f32 2.0, %v2165
        %v2170 = vsub.f32 2.0, %v2166
        %v2171 = vsub.f32 2.0, %v2167
        %v2172 = vmul.f32 %v2160, %v2168
        %v2173 = vmul.f32 %v2161, %v2169
        %v2174 = vmul.f32 %v2162, %v2170
        %v2175 = vmul.f32 %v2163, %v2171
        %v2176 = vmul.f32 %v2124, %v2172
        %v2177 = vmul.f32 %v2125, %v2173
        %v2178 = vmul.f32 %v2126, %v2174
        %v2179 = vmul.f32 %v2127, %v2175
        %v2180 = vld [vmem:[%s3] sm:$0xff]
        %v2181 = vld [vmem:[%s3 + $0x8] sm:$0xff]
        %v2182 = vld [vmem:[%s3 + $0x10] sm:$0xff]
        %v2183 = vld [vmem:[%s3 + $0x18] sm:$0xff]
        %v2184 = vld [vmem:[%s3 + $0x20] sm:$0xff]
        %v2185 = vld [vmem:[%s3 + $0x28] sm:$0xff]
        %v2186 = vld [vmem:[%s3 + $0x30] sm:$0xff]
        %v2187 = vld [vmem:[%s3 + $0x38] sm:$0xff]
        %v2188 = vld [vmem:[%s4] sm:$0x3]
        %v2190 = vlaneseq
        %v2191 = vshrl.u32 %v2190, 7
        %v2192 = vsub.s32 0, %v2191
        %v2193 = vrot.slane %v2188, %v2192
        %v2194 = vlaneseq
        %v2195 = vshrl.u32 %v2194, 7
        %v2196 = vsub.s32 1, %v2195
        %v2197 = vrot.slane %v2188, %v2196
        %2200 = vxpose.xlu0.b32.start [1/16] %v2176, 128
        %2201 = vxpose.xlu0.b32.cont [2/16] %v2177, 128
        %2202 = vxpose.xlu0.b32.cont [3/16] %v2178, 128
        %2203 = vxpose.xlu0.b32.cont [4/16] %v2179, 128
        %2204 = vxpose.xlu0.b32.cont [5/16] 0.0, 128
        %2205 = vxpose.xlu0.b32.cont [6/16] 0.0, 128
        %2206 = vxpose.xlu0.b32.cont [7/16] 0.0, 128
        %2207 = vxpose.xlu0.b32.cont [8/16] 0.0, 128
        %2208 = vxpose.xlu0.b32.cont [9/16] 0.0, 128
        %2209 = vxpose.xlu0.b32.cont [10/16] 0.0, 128
        %2210 = vxpose.xlu0.b32.cont [11/16] 0.0, 128
        %2211 = vxpose.xlu0.b32.cont [12/16] 0.0, 128
        %2212 = vxpose.xlu0.b32.cont [13/16] 0.0, 128
        %2213 = vxpose.xlu0.b32.cont [14/16] 0.0, 128
        %2214 = vxpose.xlu0.b32.cont [15/16] 0.0, 128
        %2215 = vxpose.xlu0.b32.end [16/16] 0.0, 128
        %v2216 = vpop.trf.xlu0
        %v2217 = vpop.trf.xlu0
        %v2218 = vpop.trf.xlu0
        %v2219 = vpop.trf.xlu0
        %v2220 = vpop.trf.xlu0
        %v2221 = vpop.trf.xlu0
        %v2222 = vpop.trf.xlu0
        %v2223 = vpop.trf.xlu0
        %v2224 = vpop.trf.xlu0
        %v2225 = vpop.trf.xlu0
        %v2226 = vpop.trf.xlu0
        %v2227 = vpop.trf.xlu0
        %v2228 = vpop.trf.xlu0
        %v2229 = vpop.trf.xlu0
        %v2230 = vpop.trf.xlu0
        %v2231 = vpop.trf.xlu0
        %vm2232 = vcmask 261120
        %v2234 = vsel %vm2232, %v2216, 0
        %v2237 = vsel %vm2232, %v2217, 0
        %v2240 = vsel %vm2232, %v2218, 0
        %v2243 = vsel %vm2232, %v2219, 0
        %v2246 = vsel %vm2232, %v2220, 0
        %v2249 = vsel %vm2232, %v2221, 0
        %v2252 = vsel %vm2232, %v2222, 0
        %v2255 = vsel %vm2232, %v2223, 0
        %v2258 = vsel %vm2232, %v2224, 0
        %v2261 = vsel %vm2232, %v2225, 0
        %v2264 = vsel %vm2232, %v2226, 0
        %v2267 = vsel %vm2232, %v2227, 0
        %v2270 = vsel %vm2232, %v2228, 0
        %v2273 = vsel %vm2232, %v2229, 0
        %v2276 = vsel %vm2232, %v2230, 0
        %v2279 = vsel %vm2232, %v2231, 0
        %2281 = vmatprep.subr.mxu0 0.0
        %2282 = vmatpush1.msra.mxu0 0.0
        %2283 = vmatprep.subr.mxu0 0.0
        %2284 = vmatpush1.msra.mxu0 0.0
        %2285 = vmatprep.subr.mxu0 0.0
        %2286 = vmatpush1.msra.mxu0 0.0
        %2287 = vmatprep.subr.mxu0 0.0
        %2288 = vmatpush1.msra.mxu0 0.0
        %2289 = vmatprep.subr.mxu0 0.0
        %2290 = vmatpush1.msra.mxu0 0.0
        %2291 = vmatprep.subr.mxu0 0.0
        %2292 = vmatpush1.msra.mxu0 0.0
        %2293 = vmatprep.subr.mxu0 0.0
        %2294 = vmatpush1.msra.mxu0 0.0
        %2295 = vmatprep.subr.mxu0 0.0
        %2296 = vmatpush1.msra.mxu0 0.0
        %2297 = vmatprep.subr.mxu0 0.0
        %2298 = vmatpush1.msra.mxu0 0.0
        %2299 = vmatprep.subr.mxu0 0.0
        %2300 = vmatpush1.msra.mxu0 0.0
        %2301 = vmatprep.subr.mxu0 0.0
        %2302 = vmatpush1.msra.mxu0 0.0
        %2303 = vmatprep.subr.mxu0 0.0
        %2304 = vmatpush1.msra.mxu0 0.0
        %2305 = vmatprep.subr.mxu0 %v2187
        %2306 = vmatpush1.msra.mxu0 %v2186
        %2307 = vmatprep.subr.mxu0 %v2185
        %2308 = vmatpush1.msra.mxu0 %v2184
        %2309 = vmatprep.subr.mxu0 %v2183
        %2310 = vmatpush1.msra.mxu0 %v2182
        %2311 = vmatprep.subr.mxu0 %v2181
        %2312 = vmatpush1.msra.mxu0 %v2180
        %2313 = vmatprep.subr.mxu0 0.0
        %2314 = vmatpush2.msra.mxu0 0.0
        %2315 = vmatprep.subr.mxu0 0.0
        %2316 = vmatpush2.msra.mxu0 0.0
        %2317 = vmatprep.subr.mxu0 0.0
        %2318 = vmatpush2.msra.mxu0 0.0
        %2319 = vmatprep.subr.mxu0 0.0
        %2320 = vmatpush2.msra.mxu0 0.0
        %2321 = vmatprep.subr.mxu0 0.0
        %2322 = vmatpush2.msra.mxu0 0.0
        %2323 = vmatprep.subr.mxu0 0.0
        %2324 = vmatpush2.msra.mxu0 0.0
        %2325 = vmatprep.subr.mxu0 0.0
        %2326 = vmatpush2.msra.mxu0 0.0
        %2327 = vmatprep.subr.mxu0 0.0
        %2328 = vmatpush2.msra.mxu0 0.0
        %2329 = vmatprep.subr.mxu0 0.0
        %2330 = vmatpush2.msra.mxu0 0.0
        %2331 = vmatprep.subr.mxu0 0.0
        %2332 = vmatpush2.msra.mxu0 0.0
        %2333 = vmatprep.subr.mxu0 0.0
        %2334 = vmatpush2.msra.mxu0 0.0
        %2335 = vmatprep.subr.mxu0 0.0
        %2336 = vmatpush2.msra.mxu0 0.0
        %2337 = vmatprep.subr.mxu0 0.0
        %2338 = vmatpush2.msra.mxu0 0.0
        %2339 = vmatprep.subr.mxu0 0.0
        %2340 = vmatpush2.msra.mxu0 0.0
        %2341 = vmatprep.subr.mxu0 0.0
        %2342 = vmatpush2.msra.mxu0 0.0
        %2343 = vmatprep.subr.mxu0 0.0
        %2344 = vmatpush2.msra.mxu0 0.0
        %2345 = vmatprep.mubr.f32.mxu0 0.0
        %2346 = vmatmul.mubr.f32.gmra.mxu0 %v2234
        %v2347 = vpop.f32.mrf.mxu0
        %v2348 = vadd.f32 %v2193, %v2347
        %v2349 = vpop.f32.mrf.mxu0
        %v2350 = vadd.f32 %v2197, %v2349
        %2351 = vmatprep.mubr.f32.mxu0 0.0
        %2352 = vmatmul.mubr.f32.gmra.mxu0 %v2237
        %v2353 = vpop.f32.mrf.mxu0
        %v2354 = vadd.f32 %v2193, %v2353
        %v2355 = vpop.f32.mrf.mxu0
        %v2356 = vadd.f32 %v2197, %v2355
        %2357 = vmatprep.mubr.f32.mxu0 0.0
        %2358 = vmatmul.mubr.f32.gmra.mxu0 %v2240
        %v2359 = vpop.f32.mrf.mxu0
        %v2360 = vadd.f32 %v2193, %v2359
        %v2361 = vpop.f32.mrf.mxu0
        %v2362 = vadd.f32 %v2197, %v2361
        %2363 = vmatprep.mubr.f32.mxu0 0.0
        %2364 = vmatmul.mubr.f32.gmra.mxu0 %v2243
        %v2365 = vpop.f32.mrf.mxu0
        %v2366 = vadd.f32 %v2193, %v2365
        %v2367 = vpop.f32.mrf.mxu0
        %v2368 = vadd.f32 %v2197, %v2367
        %2369 = vmatprep.mubr.f32.mxu0 0.0
        %2370 = vmatmul.mubr.f32.gmra.mxu0 %v2246
        %v2371 = vpop.f32.mrf.mxu0
        %v2372 = vadd.f32 %v2193, %v2371
        %v2373 = vpop.f32.mrf.mxu0
        %v2374 = vadd.f32 %v2197, %v2373
        %2375 = vmatprep.mubr.f32.mxu0 0.0
        %2376 = vmatmul.mubr.f32.gmra.mxu0 %v2249
        %v2377 = vpop.f32.mrf.mxu0
        %v2378 = vadd.f32 %v2193, %v2377
        %v2379 = vpop.f32.mrf.mxu0
        %v2380 = vadd.f32 %v2197, %v2379
        %2381 = vmatprep.mubr.f32.mxu0 0.0
        %2382 = vmatmul.mubr.f32.gmra.mxu0 %v2252
        %v2383 = vpop.f32.mrf.mxu0
        %v2384 = vadd.f32 %v2193, %v2383
        %v2385 = vpop.f32.mrf.mxu0
        %v2386 = vadd.f32 %v2197, %v2385
        %2387 = vmatprep.mubr.f32.mxu0 0.0
        %2388 = vmatmul.mubr.f32.gmra.mxu0 %v2255
        %v2389 = vpop.f32.mrf.mxu0
        %v2390 = vadd.f32 %v2193, %v2389
        %v2391 = vpop.f32.mrf.mxu0
        %v2392 = vadd.f32 %v2197, %v2391
        %2393 = vmatprep.mubr.f32.mxu0 0.0
        %2394 = vmatmul.mubr.f32.gmra.mxu0 %v2258
        %v2395 = vpop.f32.mrf.mxu0
        %v2396 = vadd.f32 %v2193, %v2395
        %v2397 = vpop.f32.mrf.mxu0
        %v2398 = vadd.f32 %v2197, %v2397
        %2399 = vmatprep.mubr.f32.mxu0 0.0
        %2400 = vmatmul.mubr.f32.gmra.mxu0 %v2261
        %v2401 = vpop.f32.mrf.mxu0
        %v2402 = vadd.f32 %v2193, %v2401
        %v2403 = vpop.f32.mrf.mxu0
        %v2404 = vadd.f32 %v2197, %v2403
        %2405 = vmatprep.mubr.f32.mxu0 0.0
        %2406 = vmatmul.mubr.f32.gmra.mxu0 %v2264
        %v2407 = vpop.f32.mrf.mxu0
        %v2408 = vadd.f32 %v2193, %v2407
        %v2409 = vpop.f32.mrf.mxu0
        %v2410 = vadd.f32 %v2197, %v2409
        %2411 = vmatprep.mubr.f32.mxu0 0.0
        %2412 = vmatmul.mubr.f32.gmra.mxu0 %v2267
        %v2413 = vpop.f32.mrf.mxu0
        %v2414 = vadd.f32 %v2193, %v2413
        %v2415 = vpop.f32.mrf.mxu0
        %v2416 = vadd.f32 %v2197, %v2415
        %2417 = vmatprep.mubr.f32.mxu0 0.0
        %2418 = vmatmul.mubr.f32.gmra.mxu0 %v2270
        %v2419 = vpop.f32.mrf.mxu0
        %v2420 = vadd.f32 %v2193, %v2419
        %v2421 = vpop.f32.mrf.mxu0
        %v2422 = vadd.f32 %v2197, %v2421
        %2423 = vmatprep.mubr.f32.mxu0 0.0
        %2424 = vmatmul.mubr.f32.gmra.mxu0 %v2273
        %v2425 = vpop.f32.mrf.mxu0
        %v2426 = vadd.f32 %v2193, %v2425
        %v2427 = vpop.f32.mrf.mxu0
        %v2428 = vadd.f32 %v2197, %v2427
        %2429 = vmatprep.mubr.f32.mxu0 0.0
        %2430 = vmatmul.mubr.f32.gmra.mxu0 %v2276
        %v2431 = vpop.f32.mrf.mxu0
        %v2432 = vadd.f32 %v2193, %v2431
        %v2433 = vpop.f32.mrf.mxu0
        %v2434 = vadd.f32 %v2197, %v2433
        %2435 = vmatprep.mubr.f32.mxu0 0.0
        %2436 = vmatmul.mubr.f32.gmra.mxu0 %v2279
        %v2437 = vpop.f32.mrf.mxu0
        %v2438 = vadd.f32 %v2193, %v2437
        %v2439 = vpop.f32.mrf.mxu0
        %v2440 = vadd.f32 %v2197, %v2439
        %2441 = vdwg.mxu0
        %v2442 = vadd.f32 %v2348, %v261
        %v2443 = vadd.f32 %v2350, %v262
        %v2444 = vadd.f32 %v2354, %v263
        %v2445 = vadd.f32 %v2356, %v264
        %v2446 = vadd.f32 %v2360, %v265
        %v2447 = vadd.f32 %v2362, %v266
        %v2448 = vadd.f32 %v2366, %v267
        %v2449 = vadd.f32 %v2368, %v268
        %v2450 = vadd.f32 %v2372, %v269
        %v2451 = vadd.f32 %v2374, %v270
        %v2452 = vadd.f32 %v2378, %v271
        %v2453 = vadd.f32 %v2380, %v272
        %v2454 = vadd.f32 %v2384, %v273
        %v2455 = vadd.f32 %v2386, %v274
        %v2456 = vadd.f32 %v2390, %v275
        %v2457 = vadd.f32 %v2392, %v276
        %v2458 = vadd.f32 %v2396, %v277
        %v2459 = vadd.f32 %v2398, %v278
        %v2460 = vadd.f32 %v2402, %v279
        %v2461 = vadd.f32 %v2404, %v280
        %v2462 = vadd.f32 %v2408, %v281
        %v2463 = vadd.f32 %v2410, %v282
        %v2464 = vadd.f32 %v2414, %v283
        %v2465 = vadd.f32 %v2416, %v284
        %v2466 = vadd.f32 %v2420, %v285
        %v2467 = vadd.f32 %v2422, %v286
        %v2468 = vadd.f32 %v2426, %v287
        %v2469 = vadd.f32 %v2428, %v288
        %v2470 = vadd.f32 %v2432, %v289
        %v2471 = vadd.f32 %v2434, %v290
        %v2472 = vadd.f32 %v2438, %v291
        %v2473 = vadd.f32 %v2440, %v292
        %2474 = vst [vmem:[%s258] sm:$0xff] %v2442
        %2475 = vst [vmem:[%s258 + $0x8] sm:$0xff] %v2443
        %2476 = vst [vmem:[%s258 + $0x10] sm:$0xff] %v2444
        %2477 = vst [vmem:[%s258 + $0x18] sm:$0xff] %v2445
        %2478 = vst [vmem:[%s258 + $0x20] sm:$0xff] %v2446
        %2479 = vst [vmem:[%s258 + $0x28] sm:$0xff] %v2447
        %2480 = vst [vmem:[%s258 + $0x30] sm:$0xff] %v2448
        %2481 = vst [vmem:[%s258 + $0x38] sm:$0xff] %v2449
        %2482 = vst [vmem:[%s258 + $0x40] sm:$0xff] %v2450
        %2483 = vst [vmem:[%s258 + $0x48] sm:$0xff] %v2451
        %2484 = vst [vmem:[%s258 + $0x50] sm:$0xff] %v2452
        %2485 = vst [vmem:[%s258 + $0x58] sm:$0xff] %v2453
        %2486 = vst [vmem:[%s258 + $0x60] sm:$0xff] %v2454
        %2487 = vst [vmem:[%s258 + $0x68] sm:$0xff] %v2455
        %2488 = vst [vmem:[%s258 + $0x70] sm:$0xff] %v2456
        %2489 = vst [vmem:[%s258 + $0x78] sm:$0xff] %v2457
        %2490 = vst [vmem:[%s258 + $0x80] sm:$0xff] %v2458
        %2491 = vst [vmem:[%s258 + $0x88] sm:$0xff] %v2459
        %2492 = vst [vmem:[%s258 + $0x90] sm:$0xff] %v2460
        %2493 = vst [vmem:[%s258 + $0x98] sm:$0xff] %v2461
        %2494 = vst [vmem:[%s258 + $0xa0] sm:$0xff] %v2462
        %2495 = vst [vmem:[%s258 + $0xa8] sm:$0xff] %v2463
        %2496 = vst [vmem:[%s258 + $0xb0] sm:$0xff] %v2464
        %2497 = vst [vmem:[%s258 + $0xb8] sm:$0xff] %v2465
        %2498 = vst [vmem:[%s258 + $0xc0] sm:$0xff] %v2466
        %2499 = vst [vmem:[%s258 + $0xc8] sm:$0xff] %v2467
        %2500 = vst [vmem:[%s258 + $0xd0] sm:$0xff] %v2468
        %2501 = vst [vmem:[%s258 + $0xd8] sm:$0xff] %v2469
        %2502 = vst [vmem:[%s258 + $0xe0] sm:$0xff] %v2470
        %2503 = vst [vmem:[%s258 + $0xe8] sm:$0xff] %v2471
        %2504 = vst [vmem:[%s258 + $0xf0] sm:$0xff] %v2472
        %2505 = vst [vmem:[%s258 + $0xf8] sm:$0xff] %v2473
        %s2506 = sand.u32 %s141, 1
        %s2507 = scalar_lea.sflag [#allocation4], %s2506
        %s2508 = sand.u32 %s141, 1
        %s2509 = smul.addr %s2508, 256
        %s2510 = scalar_lea.vmem [#allocation7], %s2509
        // Predicated region
        $region49: #{tpu_custom_call.1} parent=39 // pred_check
          %p2511 = pneg %p151
        $region50: #{tpu_custom_call.1} parent=39 // pred_check_branch
          %2513 = sbr.rel (%p2511) target = $region52
        $region51: #{tpu_custom_call.1} parent=39 // pred_region
          %s2514 = smul.u32 16, %s23
          %s2516 = ssub.s32 4096, 4096
          %2517 = vsyncadd %s2507, %s2516
          %s2518 = smul.addr %s2514, 2
          %s2519 = smul.addr %s2518, 128
          %s2520 = scalar_lea.hbm %s5, %s2519
          %s2521 = sshll.u32 %s2510, 4
          %s2522 = int_to_ptr.vmem [resolvable:$true] %s2521
          %2527 = dma.vmem_to_hbm [thread:$0]  %s2522, 4096, %s2520, %s2507, 256, 256, 16
        $region52: #{tpu_custom_call.1} parent=39 // pred_fallthru
          _
      $region40: #{tpu_custom_call.1} parent=5 // pred_fallthru
        _
      %p2528 = scmp.le.s32.totalorder 2, %s18
      // Predicated region
      $region53: #{tpu_custom_call.1} parent=5 // pred_check
        %p2529 = pneg %p2528
      $region54: #{tpu_custom_call.1} parent=5 // pred_check_branch
        %2531 = sbr.rel (%p2529) target = $region56
      $region55: #{tpu_custom_call.1} parent=5 // pred_region
        %s2532 = ssub.s32 %s18, 2
        // Predicated region
        $region57: #{tpu_custom_call.1} parent=55 // pred_check
          %p2533 = pneg %p157
        $region58: #{tpu_custom_call.1} parent=55 // pred_check_branch
          %2535 = sbr.rel (%p2533) target = $region60
        $region59: #{tpu_custom_call.1} parent=55 // pred_region
          %s2536 = sand.u32 %s142, 1
          %s2537 = scalar_lea.sflag [#allocation4], %s2536
          %s2538 = sand.u32 %s142, 1
          %s2539 = smul.addr %s2538, 256
          %s2540 = scalar_lea.vmem [#allocation7], %s2539
          %2541 = dma.done %s2537, 4096
        $region60: #{tpu_custom_call.1} parent=55 // pred_fallthru
          _
      $region56: #{tpu_custom_call.1} parent=5 // pred_fallthru
        _
    $region6: #{tpu_custom_call.1} parent=1 // loop_footer
      %s22 = sadd.s32 1, %s18
    $region7: #{tpu_custom_call.1} parent=1 // loop_footer_branch
      %17 = sbr.rel target = $region3
    $region8: #{tpu_custom_call.1} parent=1 // loop_exit
      _
    %2542 = vsyncpa [#allocation3], 1
    %s2543 = scalar_lea.sflag [#allocation3], 1
    %2544 = vsyncpa %s2543, 1
    %2545 = vsyncpa [#allocation6], 1
    %2546 = vsyncpa [#allocation4], 1
    %s2547 = scalar_lea.sflag [#allocation4], 1
    %2548 = vsyncpa %s2547, 1

</llo_original>
